<compile_context>
chip_gen: v5e
topology: v5e:2x2
jax: 0.10.0
libtpu: 0.0.40
codegen_flags: <defaults>
</compile_context>

<pallas_src>
import jax
import jax.numpy as jnp
from jax.experimental import pallas as pl
from jax.experimental.pallas import tpu as pltpu

LN_EPS = 1e-5


def _round_up(x, m):
    return ((x + m - 1) // m) * m


def _downsample_kernel(p_ref, gamma_ref, beta_ref, w_ref, b_ref, o_ref):
    # p_ref:      (4, tm, C)       tap k (= kh*2 + kw) of every 2x2 patch
    # gamma/beta: (1, C)           f32
    # w_ref:      (4, C, C_out_p)  matmul dtype (same as input dtype)
    # b_ref:      (1, C_out_p)     f32
    # o_ref:      (tm, C_out_p)
    tm = o_ref.shape[0]
    c_out_p = o_ref.shape[1]
    gamma = gamma_ref[...]
    beta = beta_ref[...]

    acc = jnp.zeros((tm, c_out_p), jnp.float32)
    for k in range(4):                          # static unroll over the 2x2 taps
        xk = p_ref[k].astype(jnp.float32)       # (tm, C), lane-dense
        mean = jnp.mean(xk, axis=-1, keepdims=True)
        xc = xk - mean
        var = jnp.mean(xc * xc, axis=-1, keepdims=True)   # biased, like torch
        xn = xc * jax.lax.rsqrt(var + LN_EPS) * gamma + beta
        # bf16/f32 MXU matmul with f32 accumulation; weight already in dtype.
        acc = acc + jnp.dot(xn.astype(w_ref.dtype), w_ref[k],
                            preferred_element_type=jnp.float32)
    o_ref[...] = (acc + b_ref[...]).astype(o_ref.dtype)


def downsample(x_nchw, gamma, beta, conv_w, conv_b, *, tm=512,
               channels_last_out=False):
    """ConvNeXt Downsample forward.

    x_nchw: (B, C_in, H, W); gamma/beta: (C_in,);
    conv_w: (C_out, C_in, 2, 2); conv_b: (C_out,).
    Returns (B, C_out, H//2, W//2), or NHWC if channels_last_out=True.
    """
    B, C, H, W = x_nchw.shape
    C_out = conv_w.shape[0]
    assert H % 2 == 0 and W % 2 == 0
    Ho, Wo = H // 2, W // 2
    M = B * Ho * Wo
    dtype = x_nchw.dtype
    itemsize = jnp.dtype(dtype).itemsize

    # Lane-dense output: pad C_out to a multiple of 128 so stores are unmasked.
    C_out_p = _round_up(C_out, 128)

    # Single fused layout transform: NCHW -> (tap, pixel, channel).  This is
    # the channels-last movement the module itself performs (Rearrange + LN);
    # XLA emits it as one copy and no extra patch array is built beyond it.
    x6 = x_nchw.reshape(B, C, Ho, 2, Wo, 2)
    patches = jnp.transpose(x6, (3, 5, 0, 2, 4, 1)).reshape(4, M, C)

    # Conv weight (C_out, C_in, kh, kw) -> (tap, C_in, C_out_p), pre-cast once
    # to the matmul dtype (no per-grid-step casts inside the kernel).
    w3 = jnp.transpose(conv_w, (2, 3, 1, 0)).reshape(4, C, C_out).astype(dtype)
    b2 = conv_b.astype(jnp.float32).reshape(1, C_out)
    if C_out_p != C_out:
        w3 = jnp.pad(w3, ((0, 0), (0, 0), (0, C_out_p - C_out)))
        b2 = jnp.pad(b2, ((0, 0), (0, C_out_p - C_out)))
    g2 = gamma.astype(jnp.float32).reshape(1, C)
    be2 = beta.astype(jnp.float32).reshape(1, C)

    # Row-tile selection: big tiles amortize the ~0.35us/step overhead but must
    # fit double-buffered in VMEM; keep >= 2 grid steps for the two v7x TCs.
    tm = _round_up(max(8, min(tm, M)), 8)
    if pl.cdiv(M, tm) < 2 and M > 16:
        tm = _round_up(pl.cdiv(M, 2), 8)

    def vmem_bytes(t):
        inp = 2 * t * 4 * C * itemsize          # double-buffered activation tile
        out = 2 * t * C_out_p * itemsize        # double-buffered output tile
        wgt = 2 * 4 * C * C_out_p * itemsize    # grid-invariant weight buffers
        f32 = 4 * t * (C_out_p + C)             # in-kernel f32 acc / LN values
        return inp + out + wgt + f32

    while vmem_bytes(tm) > 24 * 1024 * 1024 and tm > 64:
        tm = _round_up(tm // 2, 8)
    grid_m = pl.cdiv(M, tm)

    # Only raise the scoped-VMEM limit when the tiles actually need it (keeps
    # small-shape runs on the default limit; large shapes get explicit budget).
    vmem_limit = None
    if vmem_bytes(tm) > 12 * 1024 * 1024:
        vmem_limit = int(min(vmem_bytes(tm) + (8 << 20), 40 << 20))

    out = pl.pallas_call(
        _downsample_kernel,
        out_shape=jax.ShapeDtypeStruct((M, C_out_p), dtype),
        grid_spec=pltpu.PrefetchScalarGridSpec(
            num_scalar_prefetch=0,
            grid=(grid_m,),
            in_specs=[
                pl.BlockSpec((4, tm, C), lambda i: (0, i, 0)),
                pl.BlockSpec((1, C), lambda i: (0, 0)),
                pl.BlockSpec((1, C), lambda i: (0, 0)),
                pl.BlockSpec((4, C, C_out_p), lambda i: (0, 0, 0)),
                pl.BlockSpec((1, C_out_p), lambda i: (0, 0)),
            ],
            out_specs=pl.BlockSpec((tm, C_out_p), lambda i: (i, 0)),
        ),
        compiler_params=pltpu.CompilerParams(
            dimension_semantics=("parallel",),
            vmem_limit_bytes=vmem_limit,
        ),
    )(patches, g2, be2, w3, b2)

    # Slice off the lane padding; the slice fuses into the layout transform.
    out = out[:, :C_out].reshape(B, Ho, Wo, C_out)
    if channels_last_out:
        return out          # consumer takes NHWC: skip the NCHW round-trip
    return jnp.transpose(out, (0, 3, 1, 2))


def _reference(x_nchw, gamma, beta, conv_w, conv_b):
    # Pure-JAX reference reproducing the PyTorch module semantics.
    x = jnp.transpose(x_nchw, (0, 2, 3, 1)).astype(jnp.float32)
    mean = jnp.mean(x, axis=-1, keepdims=True)
    var = jnp.mean((x - mean) ** 2, axis=-1, keepdims=True)
    x = (x - mean) / jnp.sqrt(var + LN_EPS) * gamma + beta
    x = jnp.transpose(x, (0, 3, 1, 2))                       # back to NCHW
    out = jax.lax.conv_general_dilated(
        x, conv_w.astype(jnp.float32), window_strides=(2, 2), padding="VALID",
        dimension_numbers=("NCHW", "OIHW", "NCHW"))
    return out + conv_b[None, :, None, None]


if __name__ == "__main__":
    key = jax.random.PRNGKey(0)
    B, C_in, H, W = 2, 4, 16, 16
    C_out = 8

    k_x, k_w, k_b, k_g, k_be = jax.random.split(key, 5)
    x = jax.random.normal(k_x, (B, C_in, H, W), dtype=jnp.float32)

    # Non-trivial LayerNorm affine params to exercise the full LN path.
    gamma = 1.0 + 0.1 * jax.random.normal(k_g, (C_in,), dtype=jnp.float32)
    beta = 0.1 * jax.random.normal(k_be, (C_in,), dtype=jnp.float32)

    # Conv2d(in_dim, out_dim, 2, 2) params, deterministic synthetic init.
    fan_in = C_in * 2 * 2
    bound = 1.0 / (fan_in ** 0.5)
    conv_w = jax.random.uniform(k_w, (C_out, C_in, 2, 2), jnp.float32,
                                minval=-bound, maxval=bound)
    conv_b = jax.random.uniform(k_b, (C_out,), jnp.float32,
                                minval=-bound, maxval=bound)

    y = downsample(x, gamma, beta, conv_w, conv_b)
    y = jax.block_until_ready(y)

    y_ref = _reference(x, gamma, beta, conv_w, conv_b)
    assert y.shape == (B, C_out, H // 2, W // 2), y.shape
    assert jnp.allclose(y, y_ref, atol=1e-4, rtol=1e-4), float(
        jnp.max(jnp.abs(y - y_ref)))

    print("KERNEL_OK")
</pallas_src>

<mosaic_0001>
module attributes {stable_mosaic.version = 11 : i64} {
  func.func @_downsample_kernel(%arg0: i32, %arg1: memref<4x64x4xf32, #tpu.memory_space<vmem>>, %arg2: memref<1x4xf32, #tpu.memory_space<vmem>>, %arg3: memref<1x4xf32, #tpu.memory_space<vmem>>, %arg4: memref<4x4x128xf32, #tpu.memory_space<vmem>>, %arg5: memref<1x128xf32, #tpu.memory_space<vmem>>, %arg6: memref<64x128xf32, #tpu.memory_space<vmem>>) attributes {dimension_semantics = [#tpu.dimension_semantics<parallel>], iteration_bounds = array<i64: 2>, scalar_prefetch = 0 : i64, scratch_operands = 0 : i64, tpu.core_type = #tpu.core_type<tc>, window_params = [{transform_indices = @transform_0, window_bounds = array<i64: 4, 64, 4>}, {pipeline_mode = #tpu.pipeline_mode<synchronous>, transform_indices = @transform_1, window_bounds = array<i64: 1, 4>}, {pipeline_mode = #tpu.pipeline_mode<synchronous>, transform_indices = @transform_2, window_bounds = array<i64: 1, 4>}, {pipeline_mode = #tpu.pipeline_mode<synchronous>, transform_indices = @transform_3, window_bounds = array<i64: 4, 4, 128>}, {pipeline_mode = #tpu.pipeline_mode<synchronous>, transform_indices = @transform_4, window_bounds = array<i64: 1, 128>}, {transform_indices = @transform_5, window_bounds = array<i64: 64, 128>}]} {
    %c0 = arith.constant 0 : index
    %c0_0 = arith.constant 0 : index
    %0 = vector.load %arg2[%c0, %c0_0] : memref<1x4xf32, #tpu.memory_space<vmem>>, vector<1x4xf32>
    %c0_1 = arith.constant 0 : index
    %c0_2 = arith.constant 0 : index
    %1 = vector.load %arg3[%c0_1, %c0_2] : memref<1x4xf32, #tpu.memory_space<vmem>>, vector<1x4xf32>
    %cst = arith.constant 0.000000e+00 : f32
    %2 = vector.broadcast %cst : f32 to vector<64x128xf32>
    %c0_3 = arith.constant 0 : index
    %c0_4 = arith.constant 0 : index
    %c0_5 = arith.constant 0 : index
    %3 = vector.load %arg1[%c0_3, %c0_4, %c0_5] : memref<4x64x4xf32, #tpu.memory_space<vmem>>, vector<1x64x4xf32>
    %4 = vector.shape_cast %3 : vector<1x64x4xf32> to vector<64x4xf32>
    %cst_6 = arith.constant dense<0.000000e+00> : vector<64xf32>
    %5 = vector.multi_reduction <add>, %4, %cst_6 [1] : vector<64x4xf32> to vector<64xf32>
    %6 = vector.shape_cast %5 : vector<64xf32> to vector<64x1xf32>
    %cst_7 = arith.constant 4.000000e+00 : f32
    %7 = vector.broadcast %cst_7 : f32 to vector<64x1xf32>
    %8 = arith.divf %6, %7 : vector<64x1xf32>
    %9 = vector.broadcast %8 : vector<64x1xf32> to vector<64x4xf32>
    %10 = arith.subf %4, %9 : vector<64x4xf32>
    %11 = arith.mulf %10, %10 : vector<64x4xf32>
    %cst_8 = arith.constant dense<0.000000e+00> : vector<64xf32>
    %12 = vector.multi_reduction <add>, %11, %cst_8 [1] : vector<64x4xf32> to vector<64xf32>
    %13 = vector.shape_cast %12 : vector<64xf32> to vector<64x1xf32>
    %cst_9 = arith.constant 4.000000e+00 : f32
    %14 = vector.broadcast %cst_9 : f32 to vector<64x1xf32>
    %15 = arith.divf %13, %14 : vector<64x1xf32>
    %cst_10 = arith.constant 9.99999974E-6 : f32
    %16 = vector.broadcast %cst_10 : f32 to vector<64x1xf32>
    %17 = arith.addf %15, %16 : vector<64x1xf32>
    %18 = math.rsqrt %17 : vector<64x1xf32>
    %19 = vector.broadcast %18 : vector<64x1xf32> to vector<64x4xf32>
    %20 = arith.mulf %10, %19 : vector<64x4xf32>
    %21 = vector.broadcast %0 : vector<1x4xf32> to vector<64x4xf32>
    %22 = arith.mulf %20, %21 : vector<64x4xf32>
    %23 = vector.broadcast %1 : vector<1x4xf32> to vector<64x4xf32>
    %24 = arith.addf %22, %23 : vector<64x4xf32>
    %c0_11 = arith.constant 0 : index
    %c0_12 = arith.constant 0 : index
    %c0_13 = arith.constant 0 : index
    %25 = vector.load %arg4[%c0_11, %c0_12, %c0_13] : memref<4x4x128xf32, #tpu.memory_space<vmem>>, vector<1x4x128xf32>
    %26 = vector.shape_cast %25 : vector<1x4x128xf32> to vector<4x128xf32>
    %cst_14 = arith.constant dense<0.000000e+00> : vector<64x128xf32>
    %27 = tpu.matmul %24, %26, %cst_14 {dimension_numbers = #tpu.dot_dimension_numbers<[1], [0], [0], [1], [0, 0, 1, 1], [], []>} : vector<64x4xf32>, vector<4x128xf32>, vector<64x128xf32> -> vector<64x128xf32>
    %28 = arith.addf %2, %27 : vector<64x128xf32>
    %c1 = arith.constant 1 : index
    %c0_15 = arith.constant 0 : index
    %c0_16 = arith.constant 0 : index
    %29 = vector.load %arg1[%c1, %c0_15, %c0_16] : memref<4x64x4xf32, #tpu.memory_space<vmem>>, vector<1x64x4xf32>
    %30 = vector.shape_cast %29 : vector<1x64x4xf32> to vector<64x4xf32>
    %cst_17 = arith.constant dense<0.000000e+00> : vector<64xf32>
    %31 = vector.multi_reduction <add>, %30, %cst_17 [1] : vector<64x4xf32> to vector<64xf32>
    %32 = vector.shape_cast %31 : vector<64xf32> to vector<64x1xf32>
    %cst_18 = arith.constant 4.000000e+00 : f32
    %33 = vector.broadcast %cst_18 : f32 to vector<64x1xf32>
    %34 = arith.divf %32, %33 : vector<64x1xf32>
    %35 = vector.broadcast %34 : vector<64x1xf32> to vector<64x4xf32>
    %36 = arith.subf %30, %35 : vector<64x4xf32>
    %37 = arith.mulf %36, %36 : vector<64x4xf32>
    %cst_19 = arith.constant dense<0.000000e+00> : vector<64xf32>
    %38 = vector.multi_reduction <add>, %37, %cst_19 [1] : vector<64x4xf32> to vector<64xf32>
    %39 = vector.shape_cast %38 : vector<64xf32> to vector<64x1xf32>
    %cst_20 = arith.constant 4.000000e+00 : f32
    %40 = vector.broadcast %cst_20 : f32 to vector<64x1xf32>
    %41 = arith.divf %39, %40 : vector<64x1xf32>
    %cst_21 = arith.constant 9.99999974E-6 : f32
    %42 = vector.broadcast %cst_21 : f32 to vector<64x1xf32>
    %43 = arith.addf %41, %42 : vector<64x1xf32>
    %44 = math.rsqrt %43 : vector<64x1xf32>
    %45 = vector.broadcast %44 : vector<64x1xf32> to vector<64x4xf32>
    %46 = arith.mulf %36, %45 : vector<64x4xf32>
    %47 = vector.broadcast %0 : vector<1x4xf32> to vector<64x4xf32>
    %48 = arith.mulf %46, %47 : vector<64x4xf32>
    %49 = vector.broadcast %1 : vector<1x4xf32> to vector<64x4xf32>
    %50 = arith.addf %48, %49 : vector<64x4xf32>
    %c1_22 = arith.constant 1 : index
    %c0_23 = arith.constant 0 : index
    %c0_24 = arith.constant 0 : index
    %51 = vector.load %arg4[%c1_22, %c0_23, %c0_24] : memref<4x4x128xf32, #tpu.memory_space<vmem>>, vector<1x4x128xf32>
    %52 = vector.shape_cast %51 : vector<1x4x128xf32> to vector<4x128xf32>
    %cst_25 = arith.constant dense<0.000000e+00> : vector<64x128xf32>
    %53 = tpu.matmul %50, %52, %cst_25 {dimension_numbers = #tpu.dot_dimension_numbers<[1], [0], [0], [1], [0, 0, 1, 1], [], []>} : vector<64x4xf32>, vector<4x128xf32>, vector<64x128xf32> -> vector<64x128xf32>
    %54 = arith.addf %28, %53 : vector<64x128xf32>
    %c2 = arith.constant 2 : index
    %c0_26 = arith.constant 0 : index
    %c0_27 = arith.constant 0 : index
    %55 = vector.load %arg1[%c2, %c0_26, %c0_27] : memref<4x64x4xf32, #tpu.memory_space<vmem>>, vector<1x64x4xf32>
    %56 = vector.shape_cast %55 : vector<1x64x4xf32> to vector<64x4xf32>
    %cst_28 = arith.constant dense<0.000000e+00> : vector<64xf32>
    %57 = vector.multi_reduction <add>, %56, %cst_28 [1] : vector<64x4xf32> to vector<64xf32>
    %58 = vector.shape_cast %57 : vector<64xf32> to vector<64x1xf32>
    %cst_29 = arith.constant 4.000000e+00 : f32
    %59 = vector.broadcast %cst_29 : f32 to vector<64x1xf32>
    %60 = arith.divf %58, %59 : vector<64x1xf32>
    %61 = vector.broadcast %60 : vector<64x1xf32> to vector<64x4xf32>
    %62 = arith.subf %56, %61 : vector<64x4xf32>
    %63 = arith.mulf %62, %62 : vector<64x4xf32>
    %cst_30 = arith.constant dense<0.000000e+00> : vector<64xf32>
    %64 = vector.multi_reduction <add>, %63, %cst_30 [1] : vector<64x4xf32> to vector<64xf32>
    %65 = vector.shape_cast %64 : vector<64xf32> to vector<64x1xf32>
    %cst_31 = arith.constant 4.000000e+00 : f32
    %66 = vector.broadcast %cst_31 : f32 to vector<64x1xf32>
    %67 = arith.divf %65, %66 : vector<64x1xf32>
    %cst_32 = arith.constant 9.99999974E-6 : f32
    %68 = vector.broadcast %cst_32 : f32 to vector<64x1xf32>
    %69 = arith.addf %67, %68 : vector<64x1xf32>
    %70 = math.rsqrt %69 : vector<64x1xf32>
    %71 = vector.broadcast %70 : vector<64x1xf32> to vector<64x4xf32>
    %72 = arith.mulf %62, %71 : vector<64x4xf32>
    %73 = vector.broadcast %0 : vector<1x4xf32> to vector<64x4xf32>
    %74 = arith.mulf %72, %73 : vector<64x4xf32>
    %75 = vector.broadcast %1 : vector<1x4xf32> to vector<64x4xf32>
    %76 = arith.addf %74, %75 : vector<64x4xf32>
    %c2_33 = arith.constant 2 : index
    %c0_34 = arith.constant 0 : index
    %c0_35 = arith.constant 0 : index
    %77 = vector.load %arg4[%c2_33, %c0_34, %c0_35] : memref<4x4x128xf32, #tpu.memory_space<vmem>>, vector<1x4x128xf32>
    %78 = vector.shape_cast %77 : vector<1x4x128xf32> to vector<4x128xf32>
    %cst_36 = arith.constant dense<0.000000e+00> : vector<64x128xf32>
    %79 = tpu.matmul %76, %78, %cst_36 {dimension_numbers = #tpu.dot_dimension_numbers<[1], [0], [0], [1], [0, 0, 1, 1], [], []>} : vector<64x4xf32>, vector<4x128xf32>, vector<64x128xf32> -> vector<64x128xf32>
    %80 = arith.addf %54, %79 : vector<64x128xf32>
    %c3 = arith.constant 3 : index
    %c0_37 = arith.constant 0 : index
    %c0_38 = arith.constant 0 : index
    %81 = vector.load %arg1[%c3, %c0_37, %c0_38] : memref<4x64x4xf32, #tpu.memory_space<vmem>>, vector<1x64x4xf32>
    %82 = vector.shape_cast %81 : vector<1x64x4xf32> to vector<64x4xf32>
    %cst_39 = arith.constant dense<0.000000e+00> : vector<64xf32>
    %83 = vector.multi_reduction <add>, %82, %cst_39 [1] : vector<64x4xf32> to vector<64xf32>
    %84 = vector.shape_cast %83 : vector<64xf32> to vector<64x1xf32>
    %cst_40 = arith.constant 4.000000e+00 : f32
    %85 = vector.broadcast %cst_40 : f32 to vector<64x1xf32>
    %86 = arith.divf %84, %85 : vector<64x1xf32>
    %87 = vector.broadcast %86 : vector<64x1xf32> to vector<64x4xf32>
    %88 = arith.subf %82, %87 : vector<64x4xf32>
    %89 = arith.mulf %88, %88 : vector<64x4xf32>
    %cst_41 = arith.constant dense<0.000000e+00> : vector<64xf32>
    %90 = vector.multi_reduction <add>, %89, %cst_41 [1] : vector<64x4xf32> to vector<64xf32>
    %91 = vector.shape_cast %90 : vector<64xf32> to vector<64x1xf32>
    %cst_42 = arith.constant 4.000000e+00 : f32
    %92 = vector.broadcast %cst_42 : f32 to vector<64x1xf32>
    %93 = arith.divf %91, %92 : vector<64x1xf32>
    %cst_43 = arith.constant 9.99999974E-6 : f32
    %94 = vector.broadcast %cst_43 : f32 to vector<64x1xf32>
    %95 = arith.addf %93, %94 : vector<64x1xf32>
    %96 = math.rsqrt %95 : vector<64x1xf32>
    %97 = vector.broadcast %96 : vector<64x1xf32> to vector<64x4xf32>
    %98 = arith.mulf %88, %97 : vector<64x4xf32>
    %99 = vector.broadcast %0 : vector<1x4xf32> to vector<64x4xf32>
    %100 = arith.mulf %98, %99 : vector<64x4xf32>
    %101 = vector.broadcast %1 : vector<1x4xf32> to vector<64x4xf32>
    %102 = arith.addf %100, %101 : vector<64x4xf32>
    %c3_44 = arith.constant 3 : index
    %c0_45 = arith.constant 0 : index
    %c0_46 = arith.constant 0 : index
    %103 = vector.load %arg4[%c3_44, %c0_45, %c0_46] : memref<4x4x128xf32, #tpu.memory_space<vmem>>, vector<1x4x128xf32>
    %104 = vector.shape_cast %103 : vector<1x4x128xf32> to vector<4x128xf32>
    %cst_47 = arith.constant dense<0.000000e+00> : vector<64x128xf32>
    %105 = tpu.matmul %102, %104, %cst_47 {dimension_numbers = #tpu.dot_dimension_numbers<[1], [0], [0], [1], [0, 0, 1, 1], [], []>} : vector<64x4xf32>, vector<4x128xf32>, vector<64x128xf32> -> vector<64x128xf32>
    %106 = arith.addf %80, %105 : vector<64x128xf32>
    %c0_48 = arith.constant 0 : index
    %c0_49 = arith.constant 0 : index
    %107 = vector.load %arg5[%c0_48, %c0_49] : memref<1x128xf32, #tpu.memory_space<vmem>>, vector<1x128xf32>
    %108 = vector.broadcast %107 : vector<1x128xf32> to vector<64x128xf32>
    %109 = arith.addf %106, %108 : vector<64x128xf32>
    %c0_50 = arith.constant 0 : index
    %c0_51 = arith.constant 0 : index
    %110 = vector.load %arg6[%c0_50, %c0_51] : memref<64x128xf32, #tpu.memory_space<vmem>>, vector<64x128xf32>
    tpu.vector_store %arg6[%c0_50, %c0_51], %109 {strides = array<i32>} : memref<64x128xf32, #tpu.memory_space<vmem>>, vector<64x128xf32>,
    return
  }
  func.func @transform_0(%arg0: i32) -> (i32, i32, i32) {
    %c0_i32 = arith.constant 0 : i32
    %c0_i32_0 = arith.constant 0 : i32
    %c0_i32_1 = arith.constant 0 : i32
    return %c0_i32, %arg0, %c0_i32_0 : i32, i32, i32
  }
  func.func @transform_1(%arg0: i32) -> (i32, i32) {
    %c0_i32 = arith.constant 0 : i32
    %c0_i32_0 = arith.constant 0 : i32
    %c0_i32_1 = arith.constant 0 : i32
    return %c0_i32, %c0_i32_0 : i32, i32
  }
  func.func @transform_2(%arg0: i32) -> (i32, i32) {
    %c0_i32 = arith.constant 0 : i32
    %c0_i32_0 = arith.constant 0 : i32
    %c0_i32_1 = arith.constant 0 : i32
    return %c0_i32, %c0_i32_0 : i32, i32
  }
  func.func @transform_3(%arg0: i32) -> (i32, i32, i32) {
    %c0_i32 = arith.constant 0 : i32
    %c0_i32_0 = arith.constant 0 : i32
    %c0_i32_1 = arith.constant 0 : i32
    %c0_i32_2 = arith.constant 0 : i32
    return %c0_i32, %c0_i32_0, %c0_i32_1 : i32, i32, i32
  }
  func.func @transform_4(%arg0: i32) -> (i32, i32) {
    %c0_i32 = arith.constant 0 : i32
    %c0_i32_0 = arith.constant 0 : i32
    %c0_i32_1 = arith.constant 0 : i32
    return %c0_i32, %c0_i32_0 : i32, i32
  }
  func.func @transform_5(%arg0: i32) -> (i32, i32) {
    %c0_i32 = arith.constant 0 : i32
    %c0_i32_0 = arith.constant 0 : i32
    return %arg0, %c0_i32 : i32, i32
  }
}

</mosaic_0001>

<llo_original>
// kernel: tpu_custom_call.1
$region0: #{tpu_custom_call.1}
  #allocation0 [shape = 'u32[]', space=smem, size = 0x4, offset = 0x4, fixed_abs, tag = 'smem constant byte address 0x4 - core index']
  #allocation1 [shape = 'u32[72,128]{1,0:T(1,128)}', space=vmem, size = 0x9000, scoped, tag = 'internal scratch']
  %s0 = inlined_call_operand.vmem [shape: f32[4,128,4], index: 0, kind: input, shape index: {}]
  %s1 = inlined_call_operand.vmem [shape: f32[1,4], index: 1, kind: input, shape index: {}]
  %s2 = inlined_call_operand.vmem [shape: f32[1,4], index: 2, kind: input, shape index: {}]
  %s3 = inlined_call_operand.vmem [shape: f32[4,4,128], index: 3, kind: input, shape index: {}]
  %s4 = inlined_call_operand.vmem [shape: f32[1,128], index: 4, kind: input, shape index: {}]
  %s5 = inlined_call_operand.hbm [shape: f32[128,128], index: 5, kind: output, shape index: {}]
  %s6 = sld [smem:[#allocation0]]
  $region91: #{tpu_custom_call.1} parent=0
    _
  %s8 = ssub.s32 1, %s6
  %s9 = scalar_select 0, %s8, %s6
  $region1: #{tpu_custom_call.1} parent=0
    #allocation2 [shape = 'u8[262144]{0}', space=vmem, size = 0x40000, scoped, tag = 'input window, operand 0']
    #allocation3 [shape = 'u8[65536]{0}', space=vmem, size = 0x10000, scoped, tag = 'output window, operand 0']
    #allocation4 [shape = 's32[2]{0}', space=sflag, size = 0x8, scoped, tag = 'scoped memory for tpu_custom_call.1']
    %10 = vsyncpa [#allocation4], 0
    %s11 = scalar_lea.sflag [#allocation4], 1
    %12 = vsyncpa %s11, 0
    loop: start=0, step=1, limit=4
    $region2: #{tpu_custom_call.1} parent=1 // loop_pre_header
      _
    $region3: #{tpu_custom_call.1} parent=1 // loop_header
      %s14 = sphi 0, %s18
      %p15 = scmp.ge.s32.totalorder %s14, 4
      %s24 = sphi 0, %s26
      %s27 = sphi 0, %s24
      %s28 = sphi 0, %s27
      %s44 = sphi 0, %s28
      %s48 = sphi 0, %s48
      %s50 = sphi 0, %s48
      %s51 = sphi 0, %s50
      %s65 = sphi 0, %s51
      %s69 = sphi 0, %s69
      %s71 = sphi 0, %s69
      %s72 = sphi 0, %s71
      %s86 = sphi 0, %s72
      %s90 = sphi 0, %s90
      %s92 = sphi 0, %s90
      %s93 = sphi 0, %s92
      %s107 = sphi 0, %s93
      %s111 = sphi 0, %s111
      %s113 = sphi 0, %s111
      %s114 = sphi 0, %s113
      %s128 = sphi 0, %s114
      %s134 = sphi 0, %s136
      %s137 = sphi 0, %s134
      %s138 = sphi 0, %s137
      %s154 = sphi 0, %s138
    $region4: #{tpu_custom_call.1} parent=1 // loop_header_branch
      %17 = sbr.rel (%p15) target = $region8
    $region5: #{tpu_custom_call.1} parent=1 // loop_body
      %s19 = ssub.s32 %s14, 1
      %s20 = ssub.s32 %s14, 2
      %s21 = sadd.s32 %s14, 1
      %s22 = ssub.s32 %s14, %s21
      %p23 = scmp.eq.s32.totalorder %s22, 0
      %s25 = sadd.s32 %s24, 1
      %s26 = scalar_select %p23, %s24, %s25
      %p29 = pneg %p23
      %p30 = scmp.eq.s32.totalorder %s14, 1
      %p31 = por %p29, %p30
      %p32 = scmp.ne.s32.totalorder %s24, %s27
      %p33 = scmp.eq.s32.totalorder %s14, 0
      %p34 = por %p32, %p33
      %p35 = scmp.ne.s32.totalorder %s24, %s27
      %p36 = scmp.eq.s32.totalorder %s19, 1
      %p37 = por %p35, %p36
      %p38 = scmp.ne.s32.totalorder %s27, %s28
      %p39 = scmp.eq.s32.totalorder %s19, 0
      %p40 = por %p38, %p39
      %p41 = scmp.ne.s32.totalorder %s27, %s28
      %p42 = scmp.eq.s32.totalorder %s20, 1
      %p43 = por %p41, %p42
      %p45 = scmp.ne.s32.totalorder %s28, %s44
      %p46 = scmp.eq.s32.totalorder %s20, 0
      %p47 = por %p45, %p46
      %s49 = sadd.s32 %s48, 1
      %p52 = scmp.eq.s32.totalorder %s14, 1
      %p53 = scmp.ne.s32.totalorder %s48, %s50
      %p54 = scmp.eq.s32.totalorder %s14, 0
      %p55 = por %p53, %p54
      %p56 = scmp.ne.s32.totalorder %s48, %s50
      %p57 = scmp.eq.s32.totalorder %s19, 1
      %p58 = por %p56, %p57
      %p59 = scmp.ne.s32.totalorder %s50, %s51
      %p60 = scmp.eq.s32.totalorder %s19, 0
      %p61 = por %p59, %p60
      %p62 = scmp.ne.s32.totalorder %s50, %s51
      %p63 = scmp.eq.s32.totalorder %s20, 1
      %p64 = por %p62, %p63
      %p66 = scmp.ne.s32.totalorder %s51, %s65
      %p67 = scmp.eq.s32.totalorder %s20, 0
      %p68 = por %p66, %p67
      %s70 = sadd.s32 %s69, 1
      %p73 = scmp.eq.s32.totalorder %s14, 1
      %p74 = scmp.ne.s32.totalorder %s69, %s71
      %p75 = scmp.eq.s32.totalorder %s14, 0
      %p76 = por %p74, %p75
      %p77 = scmp.ne.s32.totalorder %s69, %s71
      %p78 = scmp.eq.s32.totalorder %s19, 1
      %p79 = por %p77, %p78
      %p80 = scmp.ne.s32.totalorder %s71, %s72
      %p81 = scmp.eq.s32.totalorder %s19, 0
      %p82 = por %p80, %p81
      %p83 = scmp.ne.s32.totalorder %s71, %s72
      %p84 = scmp.eq.s32.totalorder %s20, 1
      %p85 = por %p83, %p84
      %p87 = scmp.ne.s32.totalorder %s72, %s86
      %p88 = scmp.eq.s32.totalorder %s20, 0
      %p89 = por %p87, %p88
      %s91 = sadd.s32 %s90, 1
      %p94 = scmp.eq.s32.totalorder %s14, 1
      %p95 = scmp.ne.s32.totalorder %s90, %s92
      %p96 = scmp.eq.s32.totalorder %s14, 0
      %p97 = por %p95, %p96
      %p98 = scmp.ne.s32.totalorder %s90, %s92
      %p99 = scmp.eq.s32.totalorder %s19, 1
      %p100 = por %p98, %p99
      %p101 = scmp.ne.s32.totalorder %s92, %s93
      %p102 = scmp.eq.s32.totalorder %s19, 0
      %p103 = por %p101, %p102
      %p104 = scmp.ne.s32.totalorder %s92, %s93
      %p105 = scmp.eq.s32.totalorder %s20, 1
      %p106 = por %p104, %p105
      %p108 = scmp.ne.s32.totalorder %s93, %s107
      %p109 = scmp.eq.s32.totalorder %s20, 0
      %p110 = por %p108, %p109
      %s112 = sadd.s32 %s111, 1
      %p115 = scmp.eq.s32.totalorder %s14, 1
      %p116 = scmp.ne.s32.totalorder %s111, %s113
      %p117 = scmp.eq.s32.totalorder %s14, 0
      %p118 = por %p116, %p117
      %p119 = scmp.ne.s32.totalorder %s111, %s113
      %p120 = scmp.eq.s32.totalorder %s19, 1
      %p121 = por %p119, %p120
      %p122 = scmp.ne.s32.totalorder %s113, %s114
      %p123 = scmp.eq.s32.totalorder %s19, 0
      %p124 = por %p122, %p123
      %p125 = scmp.ne.s32.totalorder %s113, %s114
      %p126 = scmp.eq.s32.totalorder %s20, 1
      %p127 = por %p125, %p126
      %p129 = scmp.ne.s32.totalorder %s114, %s128
      %p130 = scmp.eq.s32.totalorder %s20, 0
      %p131 = por %p129, %p130
      %s132 = ssub.s32 %s14, %s21
      %p133 = scmp.eq.s32.totalorder %s132, 0
      %s135 = sadd.s32 %s134, 1
      %s136 = scalar_select %p133, %s134, %s135
      %p139 = pneg %p133
      %p140 = scmp.eq.s32.totalorder %s14, 1
      %p141 = por %p139, %p140
      %p142 = scmp.ne.s32.totalorder %s134, %s137
      %p143 = scmp.eq.s32.totalorder %s14, 0
      %p144 = por %p142, %p143
      %p145 = scmp.ne.s32.totalorder %s134, %s137
      %p146 = scmp.eq.s32.totalorder %s19, 1
      %p147 = por %p145, %p146
      %p148 = scmp.ne.s32.totalorder %s137, %s138
      %p149 = scmp.eq.s32.totalorder %s19, 0
      %p150 = por %p148, %p149
      %p151 = scmp.ne.s32.totalorder %s137, %s138
      %p152 = scmp.eq.s32.totalorder %s20, 1
      %p153 = por %p151, %p152
      %p155 = scmp.ne.s32.totalorder %s138, %s154
      %p156 = scmp.eq.s32.totalorder %s20, 0
      %p157 = por %p155, %p156
      %p158 = scmp.le.s32.totalorder 1, %s14
      %p159 = scmp.lt.s32.totalorder %s14, 3
      %p160 = pnand %p158, %p159
      %p161 = pneg %p160
      // Predicated region
      $region9: #{tpu_custom_call.1} parent=5 // pred_check
        _
      $region10: #{tpu_custom_call.1} parent=5 // pred_check_branch
        %163 = sbr.rel (%p160) target = $region12
      $region11: #{tpu_custom_call.1} parent=5 // pred_region
        %s164 = ssub.s32 %s14, 1
        // Predicated region
        $region13: #{tpu_custom_call.1} parent=11 // pred_check
          %p165 = pneg %p61
        $region14: #{tpu_custom_call.1} parent=11 // pred_check_branch
          %167 = sbr.rel (%p165) target = $region16
        $region15: #{tpu_custom_call.1} parent=11 // pred_region
          _
        $region16: #{tpu_custom_call.1} parent=11 // pred_fallthru
          _
        // Predicated region
        $region17: #{tpu_custom_call.1} parent=11 // pred_check
          %p168 = pneg %p82
        $region18: #{tpu_custom_call.1} parent=11 // pred_check_branch
          %170 = sbr.rel (%p168) target = $region20
        $region19: #{tpu_custom_call.1} parent=11 // pred_region
          _
        $region20: #{tpu_custom_call.1} parent=11 // pred_fallthru
          _
        // Predicated region
        $region21: #{tpu_custom_call.1} parent=11 // pred_check
          %p171 = pneg %p103
        $region22: #{tpu_custom_call.1} parent=11 // pred_check_branch
          %173 = sbr.rel (%p171) target = $region24
        $region23: #{tpu_custom_call.1} parent=11 // pred_region
          _
        $region24: #{tpu_custom_call.1} parent=11 // pred_fallthru
          _
        // Predicated region
        $region25: #{tpu_custom_call.1} parent=11 // pred_check
          %p174 = pneg %p124
        $region26: #{tpu_custom_call.1} parent=11 // pred_check_branch
          %176 = sbr.rel (%p174) target = $region28
        $region27: #{tpu_custom_call.1} parent=11 // pred_region
          _
        $region28: #{tpu_custom_call.1} parent=11 // pred_fallthru
          _
      $region12: #{tpu_custom_call.1} parent=5 // pred_fallthru
        _
      %p177 = scmp.lt.s32.totalorder %s14, 2
      // Predicated region
      $region29: #{tpu_custom_call.1} parent=5 // pred_check
        %p178 = pneg %p177
      $region30: #{tpu_custom_call.1} parent=5 // pred_check_branch
        %180 = sbr.rel (%p178) target = $region32
      $region31: #{tpu_custom_call.1} parent=5 // pred_region
        // Predicated region
        $region33: #{tpu_custom_call.1} parent=31 // pred_check
          %p181 = pneg %p34
        $region34: #{tpu_custom_call.1} parent=31 // pred_check_branch
          %183 = sbr.rel (%p181) target = $region36
        $region35: #{tpu_custom_call.1} parent=31 // pred_region
          %s184 = sand.u32 %s24, 1
          %s185 = sand.u32 %s24, 1
          %s186 = smul.addr %s185, 256
          %s187 = scalar_lea.vmem [#allocation2], %s186
          %s188 = smul.u32 8, %s14
          %s189 = smul.addr %s188, 8
          %s190 = scalar_lea.vmem %s0, %s189
          // Predicated region
          $region37: #{tpu_custom_call.1} parent=35 // pred_check
            _
          $region38: #{tpu_custom_call.1} parent=35 // pred_check_branch
            %192 = sbr.rel (0) target = $region40
          $region39: #{tpu_custom_call.1} parent=35 // pred_region
            // Predicated region
            $region41: #{tpu_custom_call.1} parent=39 // pred_check
              _
            $region42: #{tpu_custom_call.1} parent=39 // pred_check_branch
              %194 = sbr.rel (0) target = $region44
            $region43: #{tpu_custom_call.1} parent=39 // pred_region
              // Predicated region
              $region56: #{tpu_custom_call.1} parent=43 // pred_check
                _
              $region57: #{tpu_custom_call.1} parent=43 // pred_check_branch
                %272 = sbr.rel (0) target = $region59
              $region58: #{tpu_custom_call.1} parent=43 // pred_region
                loop: start=0, step=1, limit=1
                $region60: #{tpu_custom_call.1} parent=58 // loop_pre_header
                  _
                $region61: #{tpu_custom_call.1} parent=58 // loop_header
                  %s274 = sphi 0, %s278
                  %p275 = scmp.ge.s32.totalorder %s274, 1
                  %s279 = sphi %s190, %s190
                  %s280 = sphi %s187, %s187
                $region62: #{tpu_custom_call.1} parent=58 // loop_header_branch
                  %277 = sbr.rel (%p275) target = $region66
                $region63: #{tpu_custom_call.1} parent=58 // loop_body
                  %v281 = vld [vmem:[%s279] sm:$0xff]
                  %282 = vst [vmem:[%s280] sm:$0xff] %v281
                  %v283 = vld [vmem:[%s279 + $0x8] sm:$0xff]
                  %284 = vst [vmem:[%s280 + $0x8] sm:$0xff] %v283
                  %v285 = vld [vmem:[%s279 + $0x10] sm:$0xff]
                  %286 = vst [vmem:[%s280 + $0x10] sm:$0xff] %v285
                  %v287 = vld [vmem:[%s279 + $0x18] sm:$0xff]
                  %288 = vst [vmem:[%s280 + $0x18] sm:$0xff] %v287
                  %v289 = vld [vmem:[%s279 + $0x20] sm:$0xff]
                  %290 = vst [vmem:[%s280 + $0x20] sm:$0xff] %v289
                  %v291 = vld [vmem:[%s279 + $0x28] sm:$0xff]
                  %292 = vst [vmem:[%s280 + $0x28] sm:$0xff] %v291
                  %v293 = vld [vmem:[%s279 + $0x30] sm:$0xff]
                  %294 = vst [vmem:[%s280 + $0x30] sm:$0xff] %v293
                  %v295 = vld [vmem:[%s279 + $0x38] sm:$0xff]
                  %296 = vst [vmem:[%s280 + $0x38] sm:$0xff] %v295
                  %v297 = vld [vmem:[%s279 + $0x80] sm:$0xff]
                  %298 = vst [vmem:[%s280 + $0x40] sm:$0xff] %v297
                  %v299 = vld [vmem:[%s279 + $0x88] sm:$0xff]
                  %300 = vst [vmem:[%s280 + $0x48] sm:$0xff] %v299
                  %v301 = vld [vmem:[%s279 + $0x90] sm:$0xff]
                  %302 = vst [vmem:[%s280 + $0x50] sm:$0xff] %v301
                  %v303 = vld [vmem:[%s279 + $0x98] sm:$0xff]
                  %304 = vst [vmem:[%s280 + $0x58] sm:$0xff] %v303
                  %v305 = vld [vmem:[%s279 + $0xa0] sm:$0xff]
                  %306 = vst [vmem:[%s280 + $0x60] sm:$0xff] %v305
                  %v307 = vld [vmem:[%s279 + $0xa8] sm:$0xff]
                  %308 = vst [vmem:[%s280 + $0x68] sm:$0xff] %v307
                  %v309 = vld [vmem:[%s279 + $0xb0] sm:$0xff]
                  %310 = vst [vmem:[%s280 + $0x70] sm:$0xff] %v309
                  %v311 = vld [vmem:[%s279 + $0xb8] sm:$0xff]
                  %312 = vst [vmem:[%s280 + $0x78] sm:$0xff] %v311
                  %v313 = vld [vmem:[%s279 + $0x100] sm:$0xff]
                  %314 = vst [vmem:[%s280 + $0x80] sm:$0xff] %v313
                  %v315 = vld [vmem:[%s279 + $0x108] sm:$0xff]
                  %316 = vst [vmem:[%s280 + $0x88] sm:$0xff] %v315
                  %v317 = vld [vmem:[%s279 + $0x110] sm:$0xff]
                  %318 = vst [vmem:[%s280 + $0x90] sm:$0xff] %v317
                  %v319 = vld [vmem:[%s279 + $0x118] sm:$0xff]
                  %320 = vst [vmem:[%s280 + $0x98] sm:$0xff] %v319
                  %v321 = vld [vmem:[%s279 + $0x120] sm:$0xff]
                  %322 = vst [vmem:[%s280 + $0xa0] sm:$0xff] %v321
                  %v323 = vld [vmem:[%s279 + $0x128] sm:$0xff]
                  %324 = vst [vmem:[%s280 + $0xa8] sm:$0xff] %v323
                  %v325 = vld [vmem:[%s279 + $0x130] sm:$0xff]
                  %326 = vst [vmem:[%s280 + $0xb0] sm:$0xff] %v325
                  %v327 = vld [vmem:[%s279 + $0x138] sm:$0xff]
                  %328 = vst [vmem:[%s280 + $0xb8] sm:$0xff] %v327
                  %v329 = vld [vmem:[%s279 + $0x180] sm:$0xff]
                  %330 = vst [vmem:[%s280 + $0xc0] sm:$0xff] %v329
                  %v331 = vld [vmem:[%s279 + $0x188] sm:$0xff]
                  %332 = vst [vmem:[%s280 + $0xc8] sm:$0xff] %v331
                  %v333 = vld [vmem:[%s279 + $0x190] sm:$0xff]
                  %334 = vst [vmem:[%s280 + $0xd0] sm:$0xff] %v333
                  %v335 = vld [vmem:[%s279 + $0x198] sm:$0xff]
                  %336 = vst [vmem:[%s280 + $0xd8] sm:$0xff] %v335
                  %v337 = vld [vmem:[%s279 + $0x1a0] sm:$0xff]
                  %338 = vst [vmem:[%s280 + $0xe0] sm:$0xff] %v337
                  %v339 = vld [vmem:[%s279 + $0x1a8] sm:$0xff]
                  %340 = vst [vmem:[%s280 + $0xe8] sm:$0xff] %v339
                  %v341 = vld [vmem:[%s279 + $0x1b0] sm:$0xff]
                  %342 = vst [vmem:[%s280 + $0xf0] sm:$0xff] %v341
                  %v343 = vld [vmem:[%s279 + $0x1b8] sm:$0xff]
                  %344 = vst [vmem:[%s280 + $0xf8] sm:$0xff] %v343
                $region64: #{tpu_custom_call.1} parent=58 // loop_footer
                  %s278 = sadd.s32 1, %s274
                $region65: #{tpu_custom_call.1} parent=58 // loop_footer_branch
                  %273 = sbr.rel target = $region61
                $region66: #{tpu_custom_call.1} parent=58 // loop_exit
                  _
              $region59: #{tpu_custom_call.1} parent=43 // pred_fallthru
                _
              // Predicated region
              $region67: #{tpu_custom_call.1} parent=43 // pred_check
                _
              $region68: #{tpu_custom_call.1} parent=43 // pred_check_branch
                %346 = sbr.rel target = $region70
              $region69: #{tpu_custom_call.1} parent=43 // pred_region
                _
              $region70: #{tpu_custom_call.1} parent=43 // pred_fallthru
                _
            $region44: #{tpu_custom_call.1} parent=39 // pred_fallthru
              _
            // Predicated region
            $region45: #{tpu_custom_call.1} parent=39 // pred_check
              _
            $region46: #{tpu_custom_call.1} parent=39 // pred_check_branch
              %196 = sbr.rel target = $region48
            $region47: #{tpu_custom_call.1} parent=39 // pred_region
              %s198 = ssub.s32 256, 1
              loop: start=0, step=1, limit=1
              $region49: #{tpu_custom_call.1} parent=47 // loop_pre_header
                _
              $region50: #{tpu_custom_call.1} parent=47 // loop_header
                %s200 = sphi 0, %s204
                %p201 = scmp.ge.s32.totalorder %s200, 1
                %s205 = sphi %s190, %s190
                %s206 = sphi %s187, %s187
              $region51: #{tpu_custom_call.1} parent=47 // loop_header_branch
                %203 = sbr.rel (%p201) target = $region55
              $region52: #{tpu_custom_call.1} parent=47 // loop_body
                %v207 = vld [vmem:[%s205] sm:%s198]
                %208 = vst [vmem:[%s206] sm:%s198] %v207
                %v209 = vld [vmem:[%s205 + $0x8] sm:%s198]
                %210 = vst [vmem:[%s206 + $0x8] sm:%s198] %v209
                %v211 = vld [vmem:[%s205 + $0x10] sm:%s198]
                %212 = vst [vmem:[%s206 + $0x10] sm:%s198] %v211
                %v213 = vld [vmem:[%s205 + $0x18] sm:%s198]
                %214 = vst [vmem:[%s206 + $0x18] sm:%s198] %v213
                %v215 = vld [vmem:[%s205 + $0x20] sm:%s198]
                %216 = vst [vmem:[%s206 + $0x20] sm:%s198] %v215
                %v217 = vld [vmem:[%s205 + $0x28] sm:%s198]
                %218 = vst [vmem:[%s206 + $0x28] sm:%s198] %v217
                %v219 = vld [vmem:[%s205 + $0x30] sm:%s198]
                %220 = vst [vmem:[%s206 + $0x30] sm:%s198] %v219
                %v221 = vld [vmem:[%s205 + $0x38] sm:%s198]
                %222 = vst [vmem:[%s206 + $0x38] sm:%s198] %v221
                %v223 = vld [vmem:[%s205 + $0x80] sm:%s198]
                %224 = vst [vmem:[%s206 + $0x40] sm:%s198] %v223
                %v225 = vld [vmem:[%s205 + $0x88] sm:%s198]
                %226 = vst [vmem:[%s206 + $0x48] sm:%s198] %v225
                %v227 = vld [vmem:[%s205 + $0x90] sm:%s198]
                %228 = vst [vmem:[%s206 + $0x50] sm:%s198] %v227
                %v229 = vld [vmem:[%s205 + $0x98] sm:%s198]
                %230 = vst [vmem:[%s206 + $0x58] sm:%s198] %v229
                %v231 = vld [vmem:[%s205 + $0xa0] sm:%s198]
                %232 = vst [vmem:[%s206 + $0x60] sm:%s198] %v231
                %v233 = vld [vmem:[%s205 + $0xa8] sm:%s198]
                %234 = vst [vmem:[%s206 + $0x68] sm:%s198] %v233
                %v235 = vld [vmem:[%s205 + $0xb0] sm:%s198]
                %236 = vst [vmem:[%s206 + $0x70] sm:%s198] %v235
                %v237 = vld [vmem:[%s205 + $0xb8] sm:%s198]
                %238 = vst [vmem:[%s206 + $0x78] sm:%s198] %v237
                %v239 = vld [vmem:[%s205 + $0x100] sm:%s198]
                %240 = vst [vmem:[%s206 + $0x80] sm:%s198] %v239
                %v241 = vld [vmem:[%s205 + $0x108] sm:%s198]
                %242 = vst [vmem:[%s206 + $0x88] sm:%s198] %v241
                %v243 = vld [vmem:[%s205 + $0x110] sm:%s198]
                %244 = vst [vmem:[%s206 + $0x90] sm:%s198] %v243
                %v245 = vld [vmem:[%s205 + $0x118] sm:%s198]
                %246 = vst [vmem:[%s206 + $0x98] sm:%s198] %v245
                %v247 = vld [vmem:[%s205 + $0x120] sm:%s198]
                %248 = vst [vmem:[%s206 + $0xa0] sm:%s198] %v247
                %v249 = vld [vmem:[%s205 + $0x128] sm:%s198]
                %250 = vst [vmem:[%s206 + $0xa8] sm:%s198] %v249
                %v251 = vld [vmem:[%s205 + $0x130] sm:%s198]
                %252 = vst [vmem:[%s206 + $0xb0] sm:%s198] %v251
                %v253 = vld [vmem:[%s205 + $0x138] sm:%s198]
                %254 = vst [vmem:[%s206 + $0xb8] sm:%s198] %v253
                %v255 = vld [vmem:[%s205 + $0x180] sm:%s198]
                %256 = vst [vmem:[%s206 + $0xc0] sm:%s198] %v255
                %v257 = vld [vmem:[%s205 + $0x188] sm:%s198]
                %258 = vst [vmem:[%s206 + $0xc8] sm:%s198] %v257
                %v259 = vld [vmem:[%s205 + $0x190] sm:%s198]
                %260 = vst [vmem:[%s206 + $0xd0] sm:%s198] %v259
                %v261 = vld [vmem:[%s205 + $0x198] sm:%s198]
                %262 = vst [vmem:[%s206 + $0xd8] sm:%s198] %v261
                %v263 = vld [vmem:[%s205 + $0x1a0] sm:%s198]
                %264 = vst [vmem:[%s206 + $0xe0] sm:%s198] %v263
                %v265 = vld [vmem:[%s205 + $0x1a8] sm:%s198]
                %266 = vst [vmem:[%s206 + $0xe8] sm:%s198] %v265
                %v267 = vld [vmem:[%s205 + $0x1b0] sm:%s198]
                %268 = vst [vmem:[%s206 + $0xf0] sm:%s198] %v267
                %v269 = vld [vmem:[%s205 + $0x1b8] sm:%s198]
                %270 = vst [vmem:[%s206 + $0xf8] sm:%s198] %v269
              $region53: #{tpu_custom_call.1} parent=47 // loop_footer
                %s204 = sadd.s32 1, %s200
              $region54: #{tpu_custom_call.1} parent=47 // loop_footer_branch
                %199 = sbr.rel target = $region50
              $region55: #{tpu_custom_call.1} parent=47 // loop_exit
                _
            $region48: #{tpu_custom_call.1} parent=39 // pred_fallthru
              _
          $region40: #{tpu_custom_call.1} parent=35 // pred_fallthru
            _
          %347 = vnop
        $region36: #{tpu_custom_call.1} parent=31 // pred_fallthru
          _
      $region32: #{tpu_custom_call.1} parent=5 // pred_fallthru
        _
      %p348 = scmp.le.s32.totalorder 1, %s14
      %p349 = scmp.lt.s32.totalorder %s14, 3
      %p350 = pnand %p348, %p349
      %p351 = pneg %p350
      // Predicated region
      $region71: #{tpu_custom_call.1} parent=5 // pred_check
        _
      $region72: #{tpu_custom_call.1} parent=5 // pred_check_branch
        %353 = sbr.rel (%p350) target = $region74
      $region73: #{tpu_custom_call.1} parent=5 // pred_region
        %s354 = ssub.s32 %s14, 1
        %s355 = sand.u32 %s27, 1
        %s356 = sand.u32 %s27, 1
        %s357 = smul.addr %s356, 256
        %s358 = scalar_lea.vmem [#allocation2], %s357
        // Predicated region
        $region75: #{tpu_custom_call.1} parent=73 // pred_check
          %p359 = pneg %p40
        $region76: #{tpu_custom_call.1} parent=73 // pred_check_branch
          %361 = sbr.rel (%p359) target = $region78
        $region77: #{tpu_custom_call.1} parent=73 // pred_region
          _
        $region78: #{tpu_custom_call.1} parent=73 // pred_fallthru
          _
        %s362 = sand.u32 %s27, 1
        %s363 = sand.u32 %s27, 1
        %s364 = smul.addr %s363, 256
        %s365 = scalar_lea.vmem [#allocation2], %s364
        %p366 = pneg %p40
        %p367 = pneg %p37
        %p368 = pneg %p61
        %p369 = pneg %p58
        %p370 = pneg %p82
        %p371 = pneg %p79
        %p372 = pneg %p103
        %p373 = pneg %p100
        %p374 = pneg %p124
        %p375 = pneg %p121
        %p376 = pneg %p150
        %p377 = pneg %p147
        %s378 = sand.u32 %s137, 1
        %s379 = scalar_lea.sflag [#allocation4], %s378
        %s380 = sand.u32 %s137, 1
        %s381 = smul.addr %s380, 64
        %s382 = scalar_lea.vmem [#allocation3], %s381
        %s383 = smul.u32 8, %s19
        %s384 = smul.u32 8, %s19
        %v385 = vld [vmem:[%s1] sm:$0x1]
        %v386 = vld [vmem:[%s2] sm:$0x1]
        %v387 = vld [vmem:[%s358] sm:$0xff]
        %v388 = vld [vmem:[%s358 + $0x8] sm:$0xff]
        %v389 = vld [vmem:[%s358 + $0x10] sm:$0xff]
        %v390 = vld [vmem:[%s358 + $0x18] sm:$0xff]
        %v391 = vld [vmem:[%s358 + $0x20] sm:$0xff]
        %v392 = vld [vmem:[%s358 + $0x28] sm:$0xff]
        %v393 = vld [vmem:[%s358 + $0x30] sm:$0xff]
        %v394 = vld [vmem:[%s358 + $0x38] sm:$0xff]
        %vm395 = vcmask 31744
        %v396 = vsel %vm395, %v387, 0.0
        %397 = vadd.xlane.f32.xlu0 %v396
        %v398 = vpop.xlane.xlu0 %397
        %v399 = vsel %vm395, %v388, 0.0
        %400 = vadd.xlane.f32.xlu0 %v399
        %v401 = vpop.xlane.xlu0 %400
        %v402 = vsel %vm395, %v389, 0.0
        %403 = vadd.xlane.f32.xlu0 %v402
        %v404 = vpop.xlane.xlu0 %403
        %v405 = vsel %vm395, %v390, 0.0
        %406 = vadd.xlane.f32.xlu0 %v405
        %v407 = vpop.xlane.xlu0 %406
        %v408 = vsel %vm395, %v391, 0.0
        %409 = vadd.xlane.f32.xlu0 %v408
        %v410 = vpop.xlane.xlu0 %409
        %v411 = vsel %vm395, %v392, 0.0
        %412 = vadd.xlane.f32.xlu0 %v411
        %v413 = vpop.xlane.xlu0 %412
        %v414 = vsel %vm395, %v393, 0.0
        %415 = vadd.xlane.f32.xlu0 %v414
        %v416 = vpop.xlane.xlu0 %415
        %v417 = vsel %vm395, %v394, 0.0
        %418 = vadd.xlane.f32.xlu0 %v417
        %v419 = vpop.xlane.xlu0 %418
        %v420 = vrcp.pop 4.0
        %v421 = vmul.f32 4.0, %v420
        %v422 = vsub.f32 1.0, %v421
        %v423 = vmul.f32 %v420, %v422
        %v424 = vadd.f32 %v420, %v423
        %vm425 = vweird.f32 %v420
        %v426 = vsel %vm425, %v420, %v424
        %v427 = vmul.f32 %v398, %v426
        %v428 = vmul.f32 %v401, %v426
        %v429 = vmul.f32 %v404, %v426
        %v430 = vmul.f32 %v407, %v426
        %v431 = vmul.f32 %v410, %v426
        %v432 = vmul.f32 %v413, %v426
        %v433 = vmul.f32 %v416, %v426
        %v434 = vmul.f32 %v419, %v426
        %v435 = vsub.f32 %v387, %v427
        %v436 = vsub.f32 %v388, %v428
        %v437 = vsub.f32 %v389, %v429
        %v438 = vsub.f32 %v390, %v430
        %v439 = vsub.f32 %v391, %v431
        %v440 = vsub.f32 %v392, %v432
        %v441 = vsub.f32 %v393, %v433
        %v442 = vsub.f32 %v394, %v434
        %v443 = vmul.f32 %v435, %v435
        %v444 = vmul.f32 %v436, %v436
        %v445 = vmul.f32 %v437, %v437
        %v446 = vmul.f32 %v438, %v438
        %v447 = vmul.f32 %v439, %v439
        %v448 = vmul.f32 %v440, %v440
        %v449 = vmul.f32 %v441, %v441
        %v450 = vmul.f32 %v442, %v442
        %v451 = vsel %vm395, %v443, 0.0
        %452 = vadd.xlane.f32.xlu0 %v451
        %v453 = vpop.xlane.xlu0 %452
        %v454 = vsel %vm395, %v444, 0.0
        %455 = vadd.xlane.f32.xlu0 %v454
        %v456 = vpop.xlane.xlu0 %455
        %v457 = vsel %vm395, %v445, 0.0
        %458 = vadd.xlane.f32.xlu0 %v457
        %v459 = vpop.xlane.xlu0 %458
        %v460 = vsel %vm395, %v446, 0.0
        %461 = vadd.xlane.f32.xlu0 %v460
        %v462 = vpop.xlane.xlu0 %461
        %v463 = vsel %vm395, %v447, 0.0
        %464 = vadd.xlane.f32.xlu0 %v463
        %v465 = vpop.xlane.xlu0 %464
        %v466 = vsel %vm395, %v448, 0.0
        %467 = vadd.xlane.f32.xlu0 %v466
        %v468 = vpop.xlane.xlu0 %467
        %v469 = vsel %vm395, %v449, 0.0
        %470 = vadd.xlane.f32.xlu0 %v469
        %v471 = vpop.xlane.xlu0 %470
        %v472 = vsel %vm395, %v450, 0.0
        %473 = vadd.xlane.f32.xlu0 %v472
        %v474 = vpop.xlane.xlu0 %473
        %v475 = vmul.f32 %v453, %v426
        %v476 = vmul.f32 %v456, %v426
        %v477 = vmul.f32 %v459, %v426
        %v478 = vmul.f32 %v462, %v426
        %v479 = vmul.f32 %v465, %v426
        %v480 = vmul.f32 %v468, %v426
        %v481 = vmul.f32 %v471, %v426
        %v482 = vmul.f32 %v474, %v426
        %v483 = vadd.f32 %v475, 1e-05
        %v484 = vadd.f32 %v476, 1e-05
        %v485 = vadd.f32 %v477, 1e-05
        %v486 = vadd.f32 %v478, 1e-05
        %v487 = vadd.f32 %v479, 1e-05
        %v488 = vadd.f32 %v480, 1e-05
        %v489 = vadd.f32 %v481, 1e-05
        %v490 = vadd.f32 %v482, 1e-05
        %v491 = vrsqrt.pop %v483
        %v492 = vmul.f32 %v491, %v483
        %v493 = vmul.f32 %v492, %v491
        %v494 = vmul.f32 0.5, %v493
        %v495 = vsub.f32 1.5, %v494
        %v496 = vmul.f32 %v491, %v495
        %vm497 = vweird.f32 %v483
        %vm498 = vweird.f32 %v491
        %vm499 = vmor %vm497, %vm498
        %v500 = vsel %vm499, %v491, %v496
        %v501 = vrsqrt.pop %v484
        %v502 = vmul.f32 %v501, %v484
        %v503 = vmul.f32 %v502, %v501
        %v504 = vmul.f32 0.5, %v503
        %v505 = vsub.f32 1.5, %v504
        %v506 = vmul.f32 %v501, %v505
        %vm507 = vweird.f32 %v484
        %vm508 = vweird.f32 %v501
        %vm509 = vmor %vm507, %vm508
        %v510 = vsel %vm509, %v501, %v506
        %v511 = vrsqrt.pop %v485
        %v512 = vmul.f32 %v511, %v485
        %v513 = vmul.f32 %v512, %v511
        %v514 = vmul.f32 0.5, %v513
        %v515 = vsub.f32 1.5, %v514
        %v516 = vmul.f32 %v511, %v515
        %vm517 = vweird.f32 %v485
        %vm518 = vweird.f32 %v511
        %vm519 = vmor %vm517, %vm518
        %v520 = vsel %vm519, %v511, %v516
        %v521 = vrsqrt.pop %v486
        %v522 = vmul.f32 %v521, %v486
        %v523 = vmul.f32 %v522, %v521
        %v524 = vmul.f32 0.5, %v523
        %v525 = vsub.f32 1.5, %v524
        %v526 = vmul.f32 %v521, %v525
        %vm527 = vweird.f32 %v486
        %vm528 = vweird.f32 %v521
        %vm529 = vmor %vm527, %vm528
        %v530 = vsel %vm529, %v521, %v526
        %v531 = vrsqrt.pop %v487
        %v532 = vmul.f32 %v531, %v487
        %v533 = vmul.f32 %v532, %v531
        %v534 = vmul.f32 0.5, %v533
        %v535 = vsub.f32 1.5, %v534
        %v536 = vmul.f32 %v531, %v535
        %vm537 = vweird.f32 %v487
        %vm538 = vweird.f32 %v531
        %vm539 = vmor %vm537, %vm538
        %v540 = vsel %vm539, %v531, %v536
        %v541 = vrsqrt.pop %v488
        %v542 = vmul.f32 %v541, %v488
        %v543 = vmul.f32 %v542, %v541
        %v544 = vmul.f32 0.5, %v543
        %v545 = vsub.f32 1.5, %v544
        %v546 = vmul.f32 %v541, %v545
        %vm547 = vweird.f32 %v488
        %vm548 = vweird.f32 %v541
        %vm549 = vmor %vm547, %vm548
        %v550 = vsel %vm549, %v541, %v546
        %v551 = vrsqrt.pop %v489
        %v552 = vmul.f32 %v551, %v489
        %v553 = vmul.f32 %v552, %v551
        %v554 = vmul.f32 0.5, %v553
        %v555 = vsub.f32 1.5, %v554
        %v556 = vmul.f32 %v551, %v555
        %vm557 = vweird.f32 %v489
        %vm558 = vweird.f32 %v551
        %vm559 = vmor %vm557, %vm558
        %v560 = vsel %vm559, %v551, %v556
        %v561 = vrsqrt.pop %v490
        %v562 = vmul.f32 %v561, %v490
        %v563 = vmul.f32 %v562, %v561
        %v564 = vmul.f32 0.5, %v563
        %v565 = vsub.f32 1.5, %v564
        %v566 = vmul.f32 %v561, %v565
        %vm567 = vweird.f32 %v490
        %vm568 = vweird.f32 %v561
        %vm569 = vmor %vm567, %vm568
        %v570 = vsel %vm569, %v561, %v566
        %v571 = vmul.f32 %v435, %v500
        %v572 = vmul.f32 %v436, %v510
        %v573 = vmul.f32 %v437, %v520
        %v574 = vmul.f32 %v438, %v530
        %v575 = vmul.f32 %v439, %v540
        %v576 = vmul.f32 %v440, %v550
        %v577 = vmul.f32 %v441, %v560
        %v578 = vmul.f32 %v442, %v570
        %v580 = vperm.slane %v385, 0
        %v582 = vmul.f32 %v571, %v580
        %v583 = vmul.f32 %v572, %v580
        %v584 = vmul.f32 %v573, %v580
        %v585 = vmul.f32 %v574, %v580
        %v586 = vmul.f32 %v575, %v580
        %v587 = vmul.f32 %v576, %v580
        %v588 = vmul.f32 %v577, %v580
        %v589 = vmul.f32 %v578, %v580
        %v591 = vperm.slane %v386, 0
        %v593 = vadd.f32 %v582, %v591
        %v594 = vadd.f32 %v583, %v591
        %v595 = vadd.f32 %v584, %v591
        %v596 = vadd.f32 %v585, %v591
        %v597 = vadd.f32 %v586, %v591
        %v598 = vadd.f32 %v587, %v591
        %v599 = vadd.f32 %v588, %v591
        %v600 = vadd.f32 %v589, %v591
        %v601 = vld [vmem:[%s3] sm:$0xf]
        %s602 = scalar_lea.vmem %s358, 64 [#allocation2]
        %v603 = vld [vmem:[%s602] sm:$0xff]
        %v604 = vld [vmem:[%s602 + $0x8] sm:$0xff]
        %v605 = vld [vmem:[%s602 + $0x10] sm:$0xff]
        %v606 = vld [vmem:[%s602 + $0x18] sm:$0xff]
        %v607 = vld [vmem:[%s602 + $0x20] sm:$0xff]
        %v608 = vld [vmem:[%s602 + $0x28] sm:$0xff]
        %v609 = vld [vmem:[%s602 + $0x30] sm:$0xff]
        %v610 = vld [vmem:[%s602 + $0x38] sm:$0xff]
        %v611 = vsel %vm395, %v603, 0.0
        %612 = vadd.xlane.f32.xlu0 %v611
        %v613 = vpop.xlane.xlu0 %612
        %v614 = vsel %vm395, %v604, 0.0
        %615 = vadd.xlane.f32.xlu0 %v614
        %v616 = vpop.xlane.xlu0 %615
        %v617 = vsel %vm395, %v605, 0.0
        %618 = vadd.xlane.f32.xlu0 %v617
        %v619 = vpop.xlane.xlu0 %618
        %v620 = vsel %vm395, %v606, 0.0
        %621 = vadd.xlane.f32.xlu0 %v620
        %v622 = vpop.xlane.xlu0 %621
        %v623 = vsel %vm395, %v607, 0.0
        %624 = vadd.xlane.f32.xlu0 %v623
        %v625 = vpop.xlane.xlu0 %624
        %v626 = vsel %vm395, %v608, 0.0
        %627 = vadd.xlane.f32.xlu0 %v626
        %v628 = vpop.xlane.xlu0 %627
        %v629 = vsel %vm395, %v609, 0.0
        %630 = vadd.xlane.f32.xlu0 %v629
        %v631 = vpop.xlane.xlu0 %630
        %v632 = vsel %vm395, %v610, 0.0
        %633 = vadd.xlane.f32.xlu0 %v632
        %v634 = vpop.xlane.xlu0 %633
        %v635 = vmul.f32 %v613, %v426
        %v636 = vmul.f32 %v616, %v426
        %v637 = vmul.f32 %v619, %v426
        %v638 = vmul.f32 %v622, %v426
        %v639 = vmul.f32 %v625, %v426
        %v640 = vmul.f32 %v628, %v426
        %v641 = vmul.f32 %v631, %v426
        %v642 = vmul.f32 %v634, %v426
        %v643 = vsub.f32 %v603, %v635
        %v644 = vsub.f32 %v604, %v636
        %v645 = vsub.f32 %v605, %v637
        %v646 = vsub.f32 %v606, %v638
        %v647 = vsub.f32 %v607, %v639
        %v648 = vsub.f32 %v608, %v640
        %v649 = vsub.f32 %v609, %v641
        %v650 = vsub.f32 %v610, %v642
        %v651 = vmul.f32 %v643, %v643
        %v652 = vmul.f32 %v644, %v644
        %v653 = vmul.f32 %v645, %v645
        %v654 = vmul.f32 %v646, %v646
        %v655 = vmul.f32 %v647, %v647
        %v656 = vmul.f32 %v648, %v648
        %v657 = vmul.f32 %v649, %v649
        %v658 = vmul.f32 %v650, %v650
        %v659 = vsel %vm395, %v651, 0.0
        %660 = vadd.xlane.f32.xlu0 %v659
        %v661 = vpop.xlane.xlu0 %660
        %v662 = vsel %vm395, %v652, 0.0
        %663 = vadd.xlane.f32.xlu0 %v662
        %v664 = vpop.xlane.xlu0 %663
        %v665 = vsel %vm395, %v653, 0.0
        %666 = vadd.xlane.f32.xlu0 %v665
        %v667 = vpop.xlane.xlu0 %666
        %v668 = vsel %vm395, %v654, 0.0
        %669 = vadd.xlane.f32.xlu0 %v668
        %v670 = vpop.xlane.xlu0 %669
        %v671 = vsel %vm395, %v655, 0.0
        %672 = vadd.xlane.f32.xlu0 %v671
        %v673 = vpop.xlane.xlu0 %672
        %v674 = vsel %vm395, %v656, 0.0
        %675 = vadd.xlane.f32.xlu0 %v674
        %v676 = vpop.xlane.xlu0 %675
        %v677 = vsel %vm395, %v657, 0.0
        %678 = vadd.xlane.f32.xlu0 %v677
        %v679 = vpop.xlane.xlu0 %678
        %v680 = vsel %vm395, %v658, 0.0
        %681 = vadd.xlane.f32.xlu0 %v680
        %v682 = vpop.xlane.xlu0 %681
        %v683 = vmul.f32 %v661, %v426
        %v684 = vmul.f32 %v664, %v426
        %v685 = vmul.f32 %v667, %v426
        %v686 = vmul.f32 %v670, %v426
        %v687 = vmul.f32 %v673, %v426
        %v688 = vmul.f32 %v676, %v426
        %v689 = vmul.f32 %v679, %v426
        %v690 = vmul.f32 %v682, %v426
        %v691 = vadd.f32 %v683, 1e-05
        %v692 = vadd.f32 %v684, 1e-05
        %v693 = vadd.f32 %v685, 1e-05
        %v694 = vadd.f32 %v686, 1e-05
        %v695 = vadd.f32 %v687, 1e-05
        %v696 = vadd.f32 %v688, 1e-05
        %v697 = vadd.f32 %v689, 1e-05
        %v698 = vadd.f32 %v690, 1e-05
        %v699 = vrsqrt.pop %v691
        %v700 = vmul.f32 %v699, %v691
        %v701 = vmul.f32 %v700, %v699
        %v702 = vmul.f32 0.5, %v701
        %v703 = vsub.f32 1.5, %v702
        %v704 = vmul.f32 %v699, %v703
        %vm705 = vweird.f32 %v691
        %vm706 = vweird.f32 %v699
        %vm707 = vmor %vm705, %vm706
        %v708 = vsel %vm707, %v699, %v704
        %v709 = vrsqrt.pop %v692
        %v710 = vmul.f32 %v709, %v692
        %v711 = vmul.f32 %v710, %v709
        %v712 = vmul.f32 0.5, %v711
        %v713 = vsub.f32 1.5, %v712
        %v714 = vmul.f32 %v709, %v713
        %vm715 = vweird.f32 %v692
        %vm716 = vweird.f32 %v709
        %vm717 = vmor %vm715, %vm716
        %v718 = vsel %vm717, %v709, %v714
        %v719 = vrsqrt.pop %v693
        %v720 = vmul.f32 %v719, %v693
        %v721 = vmul.f32 %v720, %v719
        %v722 = vmul.f32 0.5, %v721
        %v723 = vsub.f32 1.5, %v722
        %v724 = vmul.f32 %v719, %v723
        %vm725 = vweird.f32 %v693
        %vm726 = vweird.f32 %v719
        %vm727 = vmor %vm725, %vm726
        %v728 = vsel %vm727, %v719, %v724
        %v729 = vrsqrt.pop %v694
        %v730 = vmul.f32 %v729, %v694
        %v731 = vmul.f32 %v730, %v729
        %v732 = vmul.f32 0.5, %v731
        %v733 = vsub.f32 1.5, %v732
        %v734 = vmul.f32 %v729, %v733
        %vm735 = vweird.f32 %v694
        %vm736 = vweird.f32 %v729
        %vm737 = vmor %vm735, %vm736
        %v738 = vsel %vm737, %v729, %v734
        %v739 = vrsqrt.pop %v695
        %v740 = vmul.f32 %v739, %v695
        %v741 = vmul.f32 %v740, %v739
        %v742 = vmul.f32 0.5, %v741
        %v743 = vsub.f32 1.5, %v742
        %v744 = vmul.f32 %v739, %v743
        %vm745 = vweird.f32 %v695
        %vm746 = vweird.f32 %v739
        %vm747 = vmor %vm745, %vm746
        %v748 = vsel %vm747, %v739, %v744
        %v749 = vrsqrt.pop %v696
        %v750 = vmul.f32 %v749, %v696
        %v751 = vmul.f32 %v750, %v749
        %v752 = vmul.f32 0.5, %v751
        %v753 = vsub.f32 1.5, %v752
        %v754 = vmul.f32 %v749, %v753
        %vm755 = vweird.f32 %v696
        %vm756 = vweird.f32 %v749
        %vm757 = vmor %vm755, %vm756
        %v758 = vsel %vm757, %v749, %v754
        %v759 = vrsqrt.pop %v697
        %v760 = vmul.f32 %v759, %v697
        %v761 = vmul.f32 %v760, %v759
        %v762 = vmul.f32 0.5, %v761
        %v763 = vsub.f32 1.5, %v762
        %v764 = vmul.f32 %v759, %v763
        %vm765 = vweird.f32 %v697
        %vm766 = vweird.f32 %v759
        %vm767 = vmor %vm765, %vm766
        %v768 = vsel %vm767, %v759, %v764
        %v769 = vrsqrt.pop %v698
        %v770 = vmul.f32 %v769, %v698
        %v771 = vmul.f32 %v770, %v769
        %v772 = vmul.f32 0.5, %v771
        %v773 = vsub.f32 1.5, %v772
        %v774 = vmul.f32 %v769, %v773
        %vm775 = vweird.f32 %v698
        %vm776 = vweird.f32 %v769
        %vm777 = vmor %vm775, %vm776
        %v778 = vsel %vm777, %v769, %v774
        %v779 = vmul.f32 %v643, %v708
        %v780 = vmul.f32 %v644, %v718
        %v781 = vmul.f32 %v645, %v728
        %v782 = vmul.f32 %v646, %v738
        %v783 = vmul.f32 %v647, %v748
        %v784 = vmul.f32 %v648, %v758
        %v785 = vmul.f32 %v649, %v768
        %v786 = vmul.f32 %v650, %v778
        %v787 = vmul.f32 %v779, %v580
        %v788 = vmul.f32 %v780, %v580
        %v789 = vmul.f32 %v781, %v580
        %v790 = vmul.f32 %v782, %v580
        %v791 = vmul.f32 %v783, %v580
        %v792 = vmul.f32 %v784, %v580
        %v793 = vmul.f32 %v785, %v580
        %v794 = vmul.f32 %v786, %v580
        %v795 = vadd.f32 %v787, %v591
        %v796 = vadd.f32 %v788, %v591
        %v797 = vadd.f32 %v789, %v591
        %v798 = vadd.f32 %v790, %v591
        %v799 = vadd.f32 %v791, %v591
        %v800 = vadd.f32 %v792, %v591
        %v801 = vadd.f32 %v793, %v591
        %v802 = vadd.f32 %v794, %v591
        %s803 = scalar_lea.vmem %s3, 4
        %v804 = vld [vmem:[%s803] sm:$0xf]
        %v806 = vsel %vm395, %v795, 0
        %v809 = vsel %vm395, %v796, 0
        %v812 = vsel %vm395, %v797, 0
        %v815 = vsel %vm395, %v798, 0
        %v818 = vsel %vm395, %v799, 0
        %v821 = vsel %vm395, %v800, 0
        %v824 = vsel %vm395, %v801, 0
        %v827 = vsel %vm395, %v802, 0
        %vm829 = vcmask 1043456
        %v831 = vsel %vm829, %v804, 0
        %833 = vmatpush.msra.mxu0 0.0
        %834 = vmatpush.msra.mxu0 0.0
        %835 = vmatpush.msra.mxu0 0.0
        %836 = vmatpush.msra.mxu0 0.0
        %837 = vmatpush.msra.mxu0 0.0
        %838 = vmatpush.msra.mxu0 0.0
        %839 = vmatpush.msra.mxu0 0.0
        %840 = vmatpush.msra.mxu0 0.0
        %841 = vmatpush.msra.mxu0 0.0
        %842 = vmatpush.msra.mxu0 0.0
        %843 = vmatpush.msra.mxu0 0.0
        %844 = vmatpush.msra.mxu0 0.0
        %845 = vmatpush.msra.mxu0 0.0
        %846 = vmatpush.msra.mxu0 0.0
        %847 = vmatpush.msra.mxu0 0.0
        %848 = vmatpush.msra.mxu0 %v831
        %849 = vmatmul.f32.gmra.mxu0 %v806
        %v850 = vpop.f32.mrf.mxu0
        %v851 = vadd.f32 0.0, %v850
        %852 = vmatmul.f32.gmra.mxu0 %v809
        %v853 = vpop.f32.mrf.mxu0
        %v854 = vadd.f32 0.0, %v853
        %855 = vmatmul.f32.gmra.mxu0 %v812
        %v856 = vpop.f32.mrf.mxu0
        %v857 = vadd.f32 0.0, %v856
        %858 = vmatmul.f32.gmra.mxu0 %v815
        %v859 = vpop.f32.mrf.mxu0
        %v860 = vadd.f32 0.0, %v859
        %861 = vmatmul.f32.gmra.mxu0 %v818
        %v862 = vpop.f32.mrf.mxu0
        %v863 = vadd.f32 0.0, %v862
        %864 = vmatmul.f32.gmra.mxu0 %v821
        %v865 = vpop.f32.mrf.mxu0
        %v866 = vadd.f32 0.0, %v865
        %867 = vmatmul.f32.gmra.mxu0 %v824
        %v868 = vpop.f32.mrf.mxu0
        %v869 = vadd.f32 0.0, %v868
        %870 = vmatmul.f32.gmra.mxu0 %v827
        %v871 = vpop.f32.mrf.mxu0
        %v872 = vadd.f32 0.0, %v871
        %873 = vdwg.mxu0
        %v875 = vsel %vm395, %v593, 0
        %v878 = vsel %vm395, %v594, 0
        %v881 = vsel %vm395, %v595, 0
        %v884 = vsel %vm395, %v596, 0
        %v887 = vsel %vm395, %v597, 0
        %v890 = vsel %vm395, %v598, 0
        %v893 = vsel %vm395, %v599, 0
        %v896 = vsel %vm395, %v600, 0
        %v899 = vsel %vm829, %v601, 0
        %901 = vmatpush.msra.mxu0 0.0
        %902 = vmatpush.msra.mxu0 0.0
        %903 = vmatpush.msra.mxu0 0.0
        %904 = vmatpush.msra.mxu0 0.0
        %905 = vmatpush.msra.mxu0 0.0
        %906 = vmatpush.msra.mxu0 0.0
        %907 = vmatpush.msra.mxu0 0.0
        %908 = vmatpush.msra.mxu0 0.0
        %909 = vmatpush.msra.mxu0 0.0
        %910 = vmatpush.msra.mxu0 0.0
        %911 = vmatpush.msra.mxu0 0.0
        %912 = vmatpush.msra.mxu0 0.0
        %913 = vmatpush.msra.mxu0 0.0
        %914 = vmatpush.msra.mxu0 0.0
        %915 = vmatpush.msra.mxu0 0.0
        %916 = vmatpush.msra.mxu0 %v899
        %917 = vmatmul.f32.gmra.mxu0 %v875
        %v918 = vpop.f32.mrf.mxu0
        %v919 = vadd.f32 %v851, %v918
        %920 = vmatmul.f32.gmra.mxu0 %v878
        %v921 = vpop.f32.mrf.mxu0
        %v922 = vadd.f32 %v854, %v921
        %923 = vmatmul.f32.gmra.mxu0 %v881
        %v924 = vpop.f32.mrf.mxu0
        %v925 = vadd.f32 %v857, %v924
        %926 = vmatmul.f32.gmra.mxu0 %v884
        %v927 = vpop.f32.mrf.mxu0
        %v928 = vadd.f32 %v860, %v927
        %929 = vmatmul.f32.gmra.mxu0 %v887
        %v930 = vpop.f32.mrf.mxu0
        %v931 = vadd.f32 %v863, %v930
        %932 = vmatmul.f32.gmra.mxu0 %v890
        %v933 = vpop.f32.mrf.mxu0
        %v934 = vadd.f32 %v866, %v933
        %935 = vmatmul.f32.gmra.mxu0 %v893
        %v936 = vpop.f32.mrf.mxu0
        %v937 = vadd.f32 %v869, %v936
        %938 = vmatmul.f32.gmra.mxu0 %v896
        %v939 = vpop.f32.mrf.mxu0
        %v940 = vadd.f32 %v872, %v939
        %941 = vdwg.mxu0
        %s942 = scalar_lea.vmem %s358, 128 [#allocation2]
        %v943 = vld [vmem:[%s942] sm:$0xff]
        %v944 = vld [vmem:[%s942 + $0x8] sm:$0xff]
        %v945 = vld [vmem:[%s942 + $0x10] sm:$0xff]
        %v946 = vld [vmem:[%s942 + $0x18] sm:$0xff]
        %v947 = vld [vmem:[%s942 + $0x20] sm:$0xff]
        %v948 = vld [vmem:[%s942 + $0x28] sm:$0xff]
        %v949 = vld [vmem:[%s942 + $0x30] sm:$0xff]
        %v950 = vld [vmem:[%s942 + $0x38] sm:$0xff]
        %v951 = vsel %vm395, %v943, 0.0
        %952 = vadd.xlane.f32.xlu0 %v951
        %v953 = vpop.xlane.xlu0 %952
        %v954 = vsel %vm395, %v944, 0.0
        %955 = vadd.xlane.f32.xlu0 %v954
        %v956 = vpop.xlane.xlu0 %955
        %v957 = vsel %vm395, %v945, 0.0
        %958 = vadd.xlane.f32.xlu0 %v957
        %v959 = vpop.xlane.xlu0 %958
        %v960 = vsel %vm395, %v946, 0.0
        %961 = vadd.xlane.f32.xlu0 %v960
        %v962 = vpop.xlane.xlu0 %961
        %v963 = vsel %vm395, %v947, 0.0
        %964 = vadd.xlane.f32.xlu0 %v963
        %v965 = vpop.xlane.xlu0 %964
        %v966 = vsel %vm395, %v948, 0.0
        %967 = vadd.xlane.f32.xlu0 %v966
        %v968 = vpop.xlane.xlu0 %967
        %v969 = vsel %vm395, %v949, 0.0
        %970 = vadd.xlane.f32.xlu0 %v969
        %v971 = vpop.xlane.xlu0 %970
        %v972 = vsel %vm395, %v950, 0.0
        %973 = vadd.xlane.f32.xlu0 %v972
        %v974 = vpop.xlane.xlu0 %973
        %v975 = vmul.f32 %v953, %v426
        %v976 = vmul.f32 %v956, %v426
        %v977 = vmul.f32 %v959, %v426
        %v978 = vmul.f32 %v962, %v426
        %v979 = vmul.f32 %v965, %v426
        %v980 = vmul.f32 %v968, %v426
        %v981 = vmul.f32 %v971, %v426
        %v982 = vmul.f32 %v974, %v426
        %v983 = vsub.f32 %v943, %v975
        %v984 = vsub.f32 %v944, %v976
        %v985 = vsub.f32 %v945, %v977
        %v986 = vsub.f32 %v946, %v978
        %v987 = vsub.f32 %v947, %v979
        %v988 = vsub.f32 %v948, %v980
        %v989 = vsub.f32 %v949, %v981
        %v990 = vsub.f32 %v950, %v982
        %v991 = vmul.f32 %v983, %v983
        %v992 = vmul.f32 %v984, %v984
        %v993 = vmul.f32 %v985, %v985
        %v994 = vmul.f32 %v986, %v986
        %v995 = vmul.f32 %v987, %v987
        %v996 = vmul.f32 %v988, %v988
        %v997 = vmul.f32 %v989, %v989
        %v998 = vmul.f32 %v990, %v990
        %v999 = vsel %vm395, %v991, 0.0
        %1000 = vadd.xlane.f32.xlu0 %v999
        %v1001 = vpop.xlane.xlu0 %1000
        %v1002 = vsel %vm395, %v992, 0.0
        %1003 = vadd.xlane.f32.xlu0 %v1002
        %v1004 = vpop.xlane.xlu0 %1003
        %v1005 = vsel %vm395, %v993, 0.0
        %1006 = vadd.xlane.f32.xlu0 %v1005
        %v1007 = vpop.xlane.xlu0 %1006
        %v1008 = vsel %vm395, %v994, 0.0
        %1009 = vadd.xlane.f32.xlu0 %v1008
        %v1010 = vpop.xlane.xlu0 %1009
        %v1011 = vsel %vm395, %v995, 0.0
        %1012 = vadd.xlane.f32.xlu0 %v1011
        %v1013 = vpop.xlane.xlu0 %1012
        %v1014 = vsel %vm395, %v996, 0.0
        %1015 = vadd.xlane.f32.xlu0 %v1014
        %v1016 = vpop.xlane.xlu0 %1015
        %v1017 = vsel %vm395, %v997, 0.0
        %1018 = vadd.xlane.f32.xlu0 %v1017
        %v1019 = vpop.xlane.xlu0 %1018
        %v1020 = vsel %vm395, %v998, 0.0
        %1021 = vadd.xlane.f32.xlu0 %v1020
        %v1022 = vpop.xlane.xlu0 %1021
        %v1023 = vmul.f32 %v1001, %v426
        %v1024 = vmul.f32 %v1004, %v426
        %v1025 = vmul.f32 %v1007, %v426
        %v1026 = vmul.f32 %v1010, %v426
        %v1027 = vmul.f32 %v1013, %v426
        %v1028 = vmul.f32 %v1016, %v426
        %v1029 = vmul.f32 %v1019, %v426
        %v1030 = vmul.f32 %v1022, %v426
        %v1031 = vadd.f32 %v1023, 1e-05
        %v1032 = vadd.f32 %v1024, 1e-05
        %v1033 = vadd.f32 %v1025, 1e-05
        %v1034 = vadd.f32 %v1026, 1e-05
        %v1035 = vadd.f32 %v1027, 1e-05
        %v1036 = vadd.f32 %v1028, 1e-05
        %v1037 = vadd.f32 %v1029, 1e-05
        %v1038 = vadd.f32 %v1030, 1e-05
        %v1039 = vrsqrt.pop %v1031
        %v1040 = vmul.f32 %v1039, %v1031
        %v1041 = vmul.f32 %v1040, %v1039
        %v1042 = vmul.f32 0.5, %v1041
        %v1043 = vsub.f32 1.5, %v1042
        %v1044 = vmul.f32 %v1039, %v1043
        %vm1045 = vweird.f32 %v1031
        %vm1046 = vweird.f32 %v1039
        %vm1047 = vmor %vm1045, %vm1046
        %v1048 = vsel %vm1047, %v1039, %v1044
        %v1049 = vrsqrt.pop %v1032
        %v1050 = vmul.f32 %v1049, %v1032
        %v1051 = vmul.f32 %v1050, %v1049
        %v1052 = vmul.f32 0.5, %v1051
        %v1053 = vsub.f32 1.5, %v1052
        %v1054 = vmul.f32 %v1049, %v1053
        %vm1055 = vweird.f32 %v1032
        %vm1056 = vweird.f32 %v1049
        %vm1057 = vmor %vm1055, %vm1056
        %v1058 = vsel %vm1057, %v1049, %v1054
        %v1059 = vrsqrt.pop %v1033
        %v1060 = vmul.f32 %v1059, %v1033
        %v1061 = vmul.f32 %v1060, %v1059
        %v1062 = vmul.f32 0.5, %v1061
        %v1063 = vsub.f32 1.5, %v1062
        %v1064 = vmul.f32 %v1059, %v1063
        %vm1065 = vweird.f32 %v1033
        %vm1066 = vweird.f32 %v1059
        %vm1067 = vmor %vm1065, %vm1066
        %v1068 = vsel %vm1067, %v1059, %v1064
        %v1069 = vrsqrt.pop %v1034
        %v1070 = vmul.f32 %v1069, %v1034
        %v1071 = vmul.f32 %v1070, %v1069
        %v1072 = vmul.f32 0.5, %v1071
        %v1073 = vsub.f32 1.5, %v1072
        %v1074 = vmul.f32 %v1069, %v1073
        %vm1075 = vweird.f32 %v1034
        %vm1076 = vweird.f32 %v1069
        %vm1077 = vmor %vm1075, %vm1076
        %v1078 = vsel %vm1077, %v1069, %v1074
        %v1079 = vrsqrt.pop %v1035
        %v1080 = vmul.f32 %v1079, %v1035
        %v1081 = vmul.f32 %v1080, %v1079
        %v1082 = vmul.f32 0.5, %v1081
        %v1083 = vsub.f32 1.5, %v1082
        %v1084 = vmul.f32 %v1079, %v1083
        %vm1085 = vweird.f32 %v1035
        %vm1086 = vweird.f32 %v1079
        %vm1087 = vmor %vm1085, %vm1086
        %v1088 = vsel %vm1087, %v1079, %v1084
        %v1089 = vrsqrt.pop %v1036
        %v1090 = vmul.f32 %v1089, %v1036
        %v1091 = vmul.f32 %v1090, %v1089
        %v1092 = vmul.f32 0.5, %v1091
        %v1093 = vsub.f32 1.5, %v1092
        %v1094 = vmul.f32 %v1089, %v1093
        %vm1095 = vweird.f32 %v1036
        %vm1096 = vweird.f32 %v1089
        %vm1097 = vmor %vm1095, %vm1096
        %v1098 = vsel %vm1097, %v1089, %v1094
        %v1099 = vrsqrt.pop %v1037
        %v1100 = vmul.f32 %v1099, %v1037
        %v1101 = vmul.f32 %v1100, %v1099
        %v1102 = vmul.f32 0.5, %v1101
        %v1103 = vsub.f32 1.5, %v1102
        %v1104 = vmul.f32 %v1099, %v1103
        %vm1105 = vweird.f32 %v1037
        %vm1106 = vweird.f32 %v1099
        %vm1107 = vmor %vm1105, %vm1106
        %v1108 = vsel %vm1107, %v1099, %v1104
        %v1109 = vrsqrt.pop %v1038
        %v1110 = vmul.f32 %v1109, %v1038
        %v1111 = vmul.f32 %v1110, %v1109
        %v1112 = vmul.f32 0.5, %v1111
        %v1113 = vsub.f32 1.5, %v1112
        %v1114 = vmul.f32 %v1109, %v1113
        %vm1115 = vweird.f32 %v1038
        %vm1116 = vweird.f32 %v1109
        %vm1117 = vmor %vm1115, %vm1116
        %v1118 = vsel %vm1117, %v1109, %v1114
        %v1119 = vmul.f32 %v983, %v1048
        %v1120 = vmul.f32 %v984, %v1058
        %v1121 = vmul.f32 %v985, %v1068
        %v1122 = vmul.f32 %v986, %v1078
        %v1123 = vmul.f32 %v987, %v1088
        %v1124 = vmul.f32 %v988, %v1098
        %v1125 = vmul.f32 %v989, %v1108
        %v1126 = vmul.f32 %v990, %v1118
        %v1127 = vmul.f32 %v1119, %v580
        %v1128 = vmul.f32 %v1120, %v580
        %v1129 = vmul.f32 %v1121, %v580
        %v1130 = vmul.f32 %v1122, %v580
        %v1131 = vmul.f32 %v1123, %v580
        %v1132 = vmul.f32 %v1124, %v580
        %v1133 = vmul.f32 %v1125, %v580
        %v1134 = vmul.f32 %v1126, %v580
        %v1135 = vadd.f32 %v1127, %v591
        %v1136 = vadd.f32 %v1128, %v591
        %v1137 = vadd.f32 %v1129, %v591
        %v1138 = vadd.f32 %v1130, %v591
        %v1139 = vadd.f32 %v1131, %v591
        %v1140 = vadd.f32 %v1132, %v591
        %v1141 = vadd.f32 %v1133, %v591
        %v1142 = vadd.f32 %v1134, %v591
        %s1143 = scalar_lea.vmem %s3, 8
        %v1144 = vld [vmem:[%s1143] sm:$0xf]
        %v1146 = vsel %vm395, %v1135, 0
        %v1149 = vsel %vm395, %v1136, 0
        %v1152 = vsel %vm395, %v1137, 0
        %v1155 = vsel %vm395, %v1138, 0
        %v1158 = vsel %vm395, %v1139, 0
        %v1161 = vsel %vm395, %v1140, 0
        %v1164 = vsel %vm395, %v1141, 0
        %v1167 = vsel %vm395, %v1142, 0
        %v1170 = vsel %vm829, %v1144, 0
        %1172 = vmatpush.msra.mxu0 0.0
        %1173 = vmatpush.msra.mxu0 0.0
        %1174 = vmatpush.msra.mxu0 0.0
        %1175 = vmatpush.msra.mxu0 0.0
        %1176 = vmatpush.msra.mxu0 0.0
        %1177 = vmatpush.msra.mxu0 0.0
        %1178 = vmatpush.msra.mxu0 0.0
        %1179 = vmatpush.msra.mxu0 0.0
        %1180 = vmatpush.msra.mxu0 0.0
        %1181 = vmatpush.msra.mxu0 0.0
        %1182 = vmatpush.msra.mxu0 0.0
        %1183 = vmatpush.msra.mxu0 0.0
        %1184 = vmatpush.msra.mxu0 0.0
        %1185 = vmatpush.msra.mxu0 0.0
        %1186 = vmatpush.msra.mxu0 0.0
        %1187 = vmatpush.msra.mxu0 %v1170
        %1188 = vmatmul.f32.gmra.mxu0 %v1146
        %v1189 = vpop.f32.mrf.mxu0
        %v1190 = vadd.f32 0.0, %v1189
        %1191 = vmatmul.f32.gmra.mxu0 %v1149
        %v1192 = vpop.f32.mrf.mxu0
        %v1193 = vadd.f32 0.0, %v1192
        %1194 = vmatmul.f32.gmra.mxu0 %v1152
        %v1195 = vpop.f32.mrf.mxu0
        %v1196 = vadd.f32 0.0, %v1195
        %1197 = vmatmul.f32.gmra.mxu0 %v1155
        %v1198 = vpop.f32.mrf.mxu0
        %v1199 = vadd.f32 0.0, %v1198
        %1200 = vmatmul.f32.gmra.mxu0 %v1158
        %v1201 = vpop.f32.mrf.mxu0
        %v1202 = vadd.f32 0.0, %v1201
        %1203 = vmatmul.f32.gmra.mxu0 %v1161
        %v1204 = vpop.f32.mrf.mxu0
        %v1205 = vadd.f32 0.0, %v1204
        %1206 = vmatmul.f32.gmra.mxu0 %v1164
        %v1207 = vpop.f32.mrf.mxu0
        %v1208 = vadd.f32 0.0, %v1207
        %1209 = vmatmul.f32.gmra.mxu0 %v1167
        %v1210 = vpop.f32.mrf.mxu0
        %v1211 = vadd.f32 0.0, %v1210
        %1212 = vdwg.mxu0
        %v1213 = vadd.f32 %v919, %v1190
        %v1214 = vadd.f32 %v922, %v1193
        %v1215 = vadd.f32 %v925, %v1196
        %v1216 = vadd.f32 %v928, %v1199
        %v1217 = vadd.f32 %v931, %v1202
        %v1218 = vadd.f32 %v934, %v1205
        %v1219 = vadd.f32 %v937, %v1208
        %v1220 = vadd.f32 %v940, %v1211
        %s1221 = scalar_lea.vmem %s358, 192 [#allocation2]
        %v1222 = vld [vmem:[%s1221] sm:$0xff]
        %v1223 = vld [vmem:[%s1221 + $0x8] sm:$0xff]
        %v1224 = vld [vmem:[%s1221 + $0x10] sm:$0xff]
        %v1225 = vld [vmem:[%s1221 + $0x18] sm:$0xff]
        %v1226 = vld [vmem:[%s1221 + $0x20] sm:$0xff]
        %v1227 = vld [vmem:[%s1221 + $0x28] sm:$0xff]
        %v1228 = vld [vmem:[%s1221 + $0x30] sm:$0xff]
        %v1229 = vld [vmem:[%s1221 + $0x38] sm:$0xff]
        %v1230 = vsel %vm395, %v1222, 0.0
        %1231 = vadd.xlane.f32.xlu0 %v1230
        %v1232 = vpop.xlane.xlu0 %1231
        %v1233 = vsel %vm395, %v1223, 0.0
        %1234 = vadd.xlane.f32.xlu0 %v1233
        %v1235 = vpop.xlane.xlu0 %1234
        %v1236 = vsel %vm395, %v1224, 0.0
        %1237 = vadd.xlane.f32.xlu0 %v1236
        %v1238 = vpop.xlane.xlu0 %1237
        %v1239 = vsel %vm395, %v1225, 0.0
        %1240 = vadd.xlane.f32.xlu0 %v1239
        %v1241 = vpop.xlane.xlu0 %1240
        %v1242 = vsel %vm395, %v1226, 0.0
        %1243 = vadd.xlane.f32.xlu0 %v1242
        %v1244 = vpop.xlane.xlu0 %1243
        %v1245 = vsel %vm395, %v1227, 0.0
        %1246 = vadd.xlane.f32.xlu0 %v1245
        %v1247 = vpop.xlane.xlu0 %1246
        %v1248 = vsel %vm395, %v1228, 0.0
        %1249 = vadd.xlane.f32.xlu0 %v1248
        %v1250 = vpop.xlane.xlu0 %1249
        %v1251 = vsel %vm395, %v1229, 0.0
        %1252 = vadd.xlane.f32.xlu0 %v1251
        %v1253 = vpop.xlane.xlu0 %1252
        %v1254 = vmul.f32 %v1232, %v426
        %v1255 = vmul.f32 %v1235, %v426
        %v1256 = vmul.f32 %v1238, %v426
        %v1257 = vmul.f32 %v1241, %v426
        %v1258 = vmul.f32 %v1244, %v426
        %v1259 = vmul.f32 %v1247, %v426
        %v1260 = vmul.f32 %v1250, %v426
        %v1261 = vmul.f32 %v1253, %v426
        %v1262 = vsub.f32 %v1222, %v1254
        %v1263 = vsub.f32 %v1223, %v1255
        %v1264 = vsub.f32 %v1224, %v1256
        %v1265 = vsub.f32 %v1225, %v1257
        %v1266 = vsub.f32 %v1226, %v1258
        %v1267 = vsub.f32 %v1227, %v1259
        %v1268 = vsub.f32 %v1228, %v1260
        %v1269 = vsub.f32 %v1229, %v1261
        %v1270 = vmul.f32 %v1262, %v1262
        %v1271 = vmul.f32 %v1263, %v1263
        %v1272 = vmul.f32 %v1264, %v1264
        %v1273 = vmul.f32 %v1265, %v1265
        %v1274 = vmul.f32 %v1266, %v1266
        %v1275 = vmul.f32 %v1267, %v1267
        %v1276 = vmul.f32 %v1268, %v1268
        %v1277 = vmul.f32 %v1269, %v1269
        %v1278 = vsel %vm395, %v1270, 0.0
        %1279 = vadd.xlane.f32.xlu0 %v1278
        %v1280 = vpop.xlane.xlu0 %1279
        %v1281 = vsel %vm395, %v1271, 0.0
        %1282 = vadd.xlane.f32.xlu0 %v1281
        %v1283 = vpop.xlane.xlu0 %1282
        %v1284 = vsel %vm395, %v1272, 0.0
        %1285 = vadd.xlane.f32.xlu0 %v1284
        %v1286 = vpop.xlane.xlu0 %1285
        %v1287 = vsel %vm395, %v1273, 0.0
        %1288 = vadd.xlane.f32.xlu0 %v1287
        %v1289 = vpop.xlane.xlu0 %1288
        %v1290 = vsel %vm395, %v1274, 0.0
        %1291 = vadd.xlane.f32.xlu0 %v1290
        %v1292 = vpop.xlane.xlu0 %1291
        %v1293 = vsel %vm395, %v1275, 0.0
        %1294 = vadd.xlane.f32.xlu0 %v1293
        %v1295 = vpop.xlane.xlu0 %1294
        %v1296 = vsel %vm395, %v1276, 0.0
        %1297 = vadd.xlane.f32.xlu0 %v1296
        %v1298 = vpop.xlane.xlu0 %1297
        %v1299 = vsel %vm395, %v1277, 0.0
        %1300 = vadd.xlane.f32.xlu0 %v1299
        %v1301 = vpop.xlane.xlu0 %1300
        %v1302 = vmul.f32 %v1280, %v426
        %v1303 = vmul.f32 %v1283, %v426
        %v1304 = vmul.f32 %v1286, %v426
        %v1305 = vmul.f32 %v1289, %v426
        %v1306 = vmul.f32 %v1292, %v426
        %v1307 = vmul.f32 %v1295, %v426
        %v1308 = vmul.f32 %v1298, %v426
        %v1309 = vmul.f32 %v1301, %v426
        %v1310 = vadd.f32 %v1302, 1e-05
        %v1311 = vadd.f32 %v1303, 1e-05
        %v1312 = vadd.f32 %v1304, 1e-05
        %v1313 = vadd.f32 %v1305, 1e-05
        %v1314 = vadd.f32 %v1306, 1e-05
        %v1315 = vadd.f32 %v1307, 1e-05
        %v1316 = vadd.f32 %v1308, 1e-05
        %v1317 = vadd.f32 %v1309, 1e-05
        %v1318 = vrsqrt.pop %v1310
        %v1319 = vmul.f32 %v1318, %v1310
        %v1320 = vmul.f32 %v1319, %v1318
        %v1321 = vmul.f32 0.5, %v1320
        %v1322 = vsub.f32 1.5, %v1321
        %v1323 = vmul.f32 %v1318, %v1322
        %vm1324 = vweird.f32 %v1310
        %vm1325 = vweird.f32 %v1318
        %vm1326 = vmor %vm1324, %vm1325
        %v1327 = vsel %vm1326, %v1318, %v1323
        %v1328 = vrsqrt.pop %v1311
        %v1329 = vmul.f32 %v1328, %v1311
        %v1330 = vmul.f32 %v1329, %v1328
        %v1331 = vmul.f32 0.5, %v1330
        %v1332 = vsub.f32 1.5, %v1331
        %v1333 = vmul.f32 %v1328, %v1332
        %vm1334 = vweird.f32 %v1311
        %vm1335 = vweird.f32 %v1328
        %vm1336 = vmor %vm1334, %vm1335
        %v1337 = vsel %vm1336, %v1328, %v1333
        %v1338 = vrsqrt.pop %v1312
        %v1339 = vmul.f32 %v1338, %v1312
        %v1340 = vmul.f32 %v1339, %v1338
        %v1341 = vmul.f32 0.5, %v1340
        %v1342 = vsub.f32 1.5, %v1341
        %v1343 = vmul.f32 %v1338, %v1342
        %vm1344 = vweird.f32 %v1312
        %vm1345 = vweird.f32 %v1338
        %vm1346 = vmor %vm1344, %vm1345
        %v1347 = vsel %vm1346, %v1338, %v1343
        %v1348 = vrsqrt.pop %v1313
        %v1349 = vmul.f32 %v1348, %v1313
        %v1350 = vmul.f32 %v1349, %v1348
        %v1351 = vmul.f32 0.5, %v1350
        %v1352 = vsub.f32 1.5, %v1351
        %v1353 = vmul.f32 %v1348, %v1352
        %vm1354 = vweird.f32 %v1313
        %vm1355 = vweird.f32 %v1348
        %vm1356 = vmor %vm1354, %vm1355
        %v1357 = vsel %vm1356, %v1348, %v1353
        %v1358 = vrsqrt.pop %v1314
        %v1359 = vmul.f32 %v1358, %v1314
        %v1360 = vmul.f32 %v1359, %v1358
        %v1361 = vmul.f32 0.5, %v1360
        %v1362 = vsub.f32 1.5, %v1361
        %v1363 = vmul.f32 %v1358, %v1362
        %vm1364 = vweird.f32 %v1314
        %vm1365 = vweird.f32 %v1358
        %vm1366 = vmor %vm1364, %vm1365
        %v1367 = vsel %vm1366, %v1358, %v1363
        %v1368 = vrsqrt.pop %v1315
        %v1369 = vmul.f32 %v1368, %v1315
        %v1370 = vmul.f32 %v1369, %v1368
        %v1371 = vmul.f32 0.5, %v1370
        %v1372 = vsub.f32 1.5, %v1371
        %v1373 = vmul.f32 %v1368, %v1372
        %vm1374 = vweird.f32 %v1315
        %vm1375 = vweird.f32 %v1368
        %vm1376 = vmor %vm1374, %vm1375
        %v1377 = vsel %vm1376, %v1368, %v1373
        %v1378 = vrsqrt.pop %v1316
        %v1379 = vmul.f32 %v1378, %v1316
        %v1380 = vmul.f32 %v1379, %v1378
        %v1381 = vmul.f32 0.5, %v1380
        %v1382 = vsub.f32 1.5, %v1381
        %v1383 = vmul.f32 %v1378, %v1382
        %vm1384 = vweird.f32 %v1316
        %vm1385 = vweird.f32 %v1378
        %vm1386 = vmor %vm1384, %vm1385
        %v1387 = vsel %vm1386, %v1378, %v1383
        %v1388 = vrsqrt.pop %v1317
        %v1389 = vmul.f32 %v1388, %v1317
        %v1390 = vmul.f32 %v1389, %v1388
        %v1391 = vmul.f32 0.5, %v1390
        %v1392 = vsub.f32 1.5, %v1391
        %v1393 = vmul.f32 %v1388, %v1392
        %vm1394 = vweird.f32 %v1317
        %vm1395 = vweird.f32 %v1388
        %vm1396 = vmor %vm1394, %vm1395
        %v1397 = vsel %vm1396, %v1388, %v1393
        %v1398 = vmul.f32 %v1262, %v1327
        %v1399 = vmul.f32 %v1263, %v1337
        %v1400 = vmul.f32 %v1264, %v1347
        %v1401 = vmul.f32 %v1265, %v1357
        %v1402 = vmul.f32 %v1266, %v1367
        %v1403 = vmul.f32 %v1267, %v1377
        %v1404 = vmul.f32 %v1268, %v1387
        %v1405 = vmul.f32 %v1269, %v1397
        %v1406 = vmul.f32 %v1398, %v580
        %v1407 = vmul.f32 %v1399, %v580
        %v1408 = vmul.f32 %v1400, %v580
        %v1409 = vmul.f32 %v1401, %v580
        %v1410 = vmul.f32 %v1402, %v580
        %v1411 = vmul.f32 %v1403, %v580
        %v1412 = vmul.f32 %v1404, %v580
        %v1413 = vmul.f32 %v1405, %v580
        %v1414 = vadd.f32 %v1406, %v591
        %v1415 = vadd.f32 %v1407, %v591
        %v1416 = vadd.f32 %v1408, %v591
        %v1417 = vadd.f32 %v1409, %v591
        %v1418 = vadd.f32 %v1410, %v591
        %v1419 = vadd.f32 %v1411, %v591
        %v1420 = vadd.f32 %v1412, %v591
        %v1421 = vadd.f32 %v1413, %v591
        %s1422 = scalar_lea.vmem %s3, 12
        %v1423 = vld [vmem:[%s1422] sm:$0xf]
        %v1425 = vsel %vm395, %v1414, 0
        %v1428 = vsel %vm395, %v1415, 0
        %v1431 = vsel %vm395, %v1416, 0
        %v1434 = vsel %vm395, %v1417, 0
        %v1437 = vsel %vm395, %v1418, 0
        %v1440 = vsel %vm395, %v1419, 0
        %v1443 = vsel %vm395, %v1420, 0
        %v1446 = vsel %vm395, %v1421, 0
        %v1449 = vsel %vm829, %v1423, 0
        %1451 = vmatpush.msra.mxu0 0.0
        %1452 = vmatpush.msra.mxu0 0.0
        %1453 = vmatpush.msra.mxu0 0.0
        %1454 = vmatpush.msra.mxu0 0.0
        %1455 = vmatpush.msra.mxu0 0.0
        %1456 = vmatpush.msra.mxu0 0.0
        %1457 = vmatpush.msra.mxu0 0.0
        %1458 = vmatpush.msra.mxu0 0.0
        %1459 = vmatpush.msra.mxu0 0.0
        %1460 = vmatpush.msra.mxu0 0.0
        %1461 = vmatpush.msra.mxu0 0.0
        %1462 = vmatpush.msra.mxu0 0.0
        %1463 = vmatpush.msra.mxu0 0.0
        %1464 = vmatpush.msra.mxu0 0.0
        %1465 = vmatpush.msra.mxu0 0.0
        %1466 = vmatpush.msra.mxu0 %v1449
        %1467 = vmatmul.f32.gmra.mxu0 %v1425
        %v1468 = vpop.f32.mrf.mxu0
        %v1469 = vadd.f32 0.0, %v1468
        %1470 = vmatmul.f32.gmra.mxu0 %v1428
        %v1471 = vpop.f32.mrf.mxu0
        %v1472 = vadd.f32 0.0, %v1471
        %1473 = vmatmul.f32.gmra.mxu0 %v1431
        %v1474 = vpop.f32.mrf.mxu0
        %v1475 = vadd.f32 0.0, %v1474
        %1476 = vmatmul.f32.gmra.mxu0 %v1434
        %v1477 = vpop.f32.mrf.mxu0
        %v1478 = vadd.f32 0.0, %v1477
        %1479 = vmatmul.f32.gmra.mxu0 %v1437
        %v1480 = vpop.f32.mrf.mxu0
        %v1481 = vadd.f32 0.0, %v1480
        %1482 = vmatmul.f32.gmra.mxu0 %v1440
        %v1483 = vpop.f32.mrf.mxu0
        %v1484 = vadd.f32 0.0, %v1483
        %1485 = vmatmul.f32.gmra.mxu0 %v1443
        %v1486 = vpop.f32.mrf.mxu0
        %v1487 = vadd.f32 0.0, %v1486
        %1488 = vmatmul.f32.gmra.mxu0 %v1446
        %v1489 = vpop.f32.mrf.mxu0
        %v1490 = vadd.f32 0.0, %v1489
        %1491 = vdwg.mxu0
        %v1492 = vadd.f32 %v1213, %v1469
        %v1493 = vadd.f32 %v1214, %v1472
        %v1494 = vadd.f32 %v1215, %v1475
        %v1495 = vadd.f32 %v1216, %v1478
        %v1496 = vadd.f32 %v1217, %v1481
        %v1497 = vadd.f32 %v1218, %v1484
        %v1498 = vadd.f32 %v1219, %v1487
        %v1499 = vadd.f32 %v1220, %v1490
        %v1500 = vld [vmem:[%s4] sm:$0x1]
        %v1502 = vperm.slane %v1500, 0
        %v1504 = vadd.f32 %v1492, %v1502
        %v1505 = vadd.f32 %v1493, %v1502
        %v1506 = vadd.f32 %v1494, %v1502
        %v1507 = vadd.f32 %v1495, %v1502
        %v1508 = vadd.f32 %v1496, %v1502
        %v1509 = vadd.f32 %v1497, %v1502
        %v1510 = vadd.f32 %v1498, %v1502
        %v1511 = vadd.f32 %v1499, %v1502
        %1512 = vst [vmem:[%s382] sm:$0xff] %v1504
        %1513 = vst [vmem:[%s382 + $0x8] sm:$0xff] %v1505
        %1514 = vst [vmem:[%s382 + $0x10] sm:$0xff] %v1506
        %1515 = vst [vmem:[%s382 + $0x18] sm:$0xff] %v1507
        %1516 = vst [vmem:[%s382 + $0x20] sm:$0xff] %v1508
        %1517 = vst [vmem:[%s382 + $0x28] sm:$0xff] %v1509
        %1518 = vst [vmem:[%s382 + $0x30] sm:$0xff] %v1510
        %1519 = vst [vmem:[%s382 + $0x38] sm:$0xff] %v1511
        %s1520 = sand.u32 %s137, 1
        %s1521 = scalar_lea.sflag [#allocation4], %s1520
        %s1522 = sand.u32 %s137, 1
        %s1523 = smul.addr %s1522, 64
        %s1524 = scalar_lea.vmem [#allocation3], %s1523
        // Predicated region
        $region79: #{tpu_custom_call.1} parent=73 // pred_check
          %p1525 = pneg %p147
        $region80: #{tpu_custom_call.1} parent=73 // pred_check_branch
          %1527 = sbr.rel (%p1525) target = $region82
        $region81: #{tpu_custom_call.1} parent=73 // pred_region
          %s1528 = smul.u32 8, %s19
          %1530 = vsyncadd %s1521, 0
          %s1531 = smul.addr %s1528, 8
          %s1532 = scalar_lea.hbm %s5, %s1531
          %s1533 = sshll.u32 %s1524, 4
          %s1534 = int_to_ptr.vmem [resolvable:$true] %s1533
          %s1535 = sshll.u32 %s1532, 4
          %s1536 = int_to_ptr.hbm [resolvable:$true] %s1535
          %1541 = dma.vmem_to_hbm [thread:$0]  %s1534, 1024, %s1536, %s1521, 128, 128, 8
        $region82: #{tpu_custom_call.1} parent=73 // pred_fallthru
          _
      $region74: #{tpu_custom_call.1} parent=5 // pred_fallthru
        _
      %p1542 = scmp.le.s32.totalorder 2, %s14
      // Predicated region
      $region83: #{tpu_custom_call.1} parent=5 // pred_check
        %p1543 = pneg %p1542
      $region84: #{tpu_custom_call.1} parent=5 // pred_check_branch
        %1545 = sbr.rel (%p1543) target = $region86
      $region85: #{tpu_custom_call.1} parent=5 // pred_region
        %s1546 = ssub.s32 %s14, 2
        // Predicated region
        $region87: #{tpu_custom_call.1} parent=85 // pred_check
          %p1547 = pneg %p153
        $region88: #{tpu_custom_call.1} parent=85 // pred_check_branch
          %1549 = sbr.rel (%p1547) target = $region90
        $region89: #{tpu_custom_call.1} parent=85 // pred_region
          %s1550 = sand.u32 %s138, 1
          %s1551 = scalar_lea.sflag [#allocation4], %s1550
          %s1552 = sand.u32 %s138, 1
          %s1553 = smul.addr %s1552, 64
          %s1554 = scalar_lea.vmem [#allocation3], %s1553
          %1556 = dma.done %s1551, 1024
        $region90: #{tpu_custom_call.1} parent=85 // pred_fallthru
          _
      $region86: #{tpu_custom_call.1} parent=5 // pred_fallthru
        _
    $region6: #{tpu_custom_call.1} parent=1 // loop_footer
      %s18 = sadd.s32 1, %s14
    $region7: #{tpu_custom_call.1} parent=1 // loop_footer_branch
      %13 = sbr.rel target = $region3
    $region8: #{tpu_custom_call.1} parent=1 // loop_exit
      _
    %1557 = vsyncpa [#allocation4], 1
    %s1558 = scalar_lea.sflag [#allocation4], 1
    %1559 = vsyncpa %s1558, 1

</llo_original>
